<compile_context>
chip_gen: v5e
topology: v5e:2x2
jax: 0.10.0
libtpu: 0.0.40
codegen_flags: <defaults>
</compile_context>

<pallas_src>
import functools

import jax
import jax.numpy as jnp
from jax.experimental import pallas as pl
from jax.experimental.pallas import tpu as pltpu


def _round_up(x, m):
    return ((x + m - 1) // m) * m


def _ffn_kernel(x_ref, w1_ref, b1_ref, w2_ref, b2_ref, o_ref, acc_ref):
    """One (row-tile, F-tile) grid step of y = relu(x @ W1 + b1) @ W2 + b2."""
    f = pl.program_id(1)

    @pl.when(f == 0)
    def _init():
        acc_ref[...] = jnp.zeros_like(acc_ref)

    # First linear + ReLU on this F-slice (f32 accumulation on the MXU).
    h = jnp.dot(x_ref[...], w1_ref[...], preferred_element_type=jnp.float32)
    h = jnp.maximum(h + b1_ref[...].astype(jnp.float32), 0.0)     # (tm, tf)
    # (Dropout = identity in eval mode.)

    # Second linear: partial product over this F-slice, accumulated in f32.
    acc_ref[...] += jnp.dot(h.astype(w2_ref.dtype), w2_ref[...],
                            preferred_element_type=jnp.float32)

    @pl.when(f == pl.num_programs(1) - 1)
    def _finalize():
        # b2 is added exactly once, at the final F tile.
        o_ref[...] = (acc_ref[...] + b2_ref[...].astype(jnp.float32)
                      ).astype(o_ref.dtype)


@functools.partial(jax.jit, static_argnames=("block_m", "block_f"))
def position_wise_fc(x, w1, b1, w2, b2, *, block_m=256, block_f=512):
    """x: [B, S, D]; w1: [D, F]; b1: [F]; w2: [F, D]; b2: [D].

    Weights are stored [in_dim, out_dim] (transposed vs. torch.nn.Linear).
    """
    B, S, D = x.shape
    F_dim = w1.shape[1]
    assert w1.shape == (D, F_dim) and b1.shape == (F_dim,)
    assert w2.shape == (F_dim, D) and b2.shape == (D,)

    M = B * S
    x2d = x.reshape(M, D)

    # Row tile: multiple of 8 sublanes (f32); F tile: multiple of 128 lanes.
    tm = min(_round_up(block_m, 8), _round_up(M, 8))
    tf = min(_round_up(block_f, 128), _round_up(F_dim, 128))
    m_pad = _round_up(M, tm)
    f_pad = _round_up(F_dim, tf)

    # Zero-padding is exact along F (relu(0)=0, zero W2 rows contribute 0);
    # padded rows along M are sliced off below.
    if m_pad != M:
        x2d = jnp.pad(x2d, ((0, m_pad - M), (0, 0)))
    if f_pad != F_dim:
        w1 = jnp.pad(w1, ((0, 0), (0, f_pad - F_dim)))
        b1 = jnp.pad(b1, ((0, f_pad - F_dim),))
        w2 = jnp.pad(w2, ((0, f_pad - F_dim), (0, 0)))

    b1_2d = b1.reshape(1, f_pad)
    b2_2d = b2.reshape(1, D)

    grid = (m_pad // tm, f_pad // tf)

    # VMEM budget: double-buffered x/out/weight tiles + f32 accumulator + biases.
    x_bytes = x.dtype.itemsize
    w_bytes = w1.dtype.itemsize
    vmem_needed = (
        2 * tm * D * x_bytes            # x tiles (double-buffered)
        + 2 * tm * D * x_bytes          # output tiles
        + 2 * 2 * tf * D * w_bytes      # W1 + W2 tiles (double-buffered)
        + 2 * (tf + D) * w_bytes        # b1 + b2
        + tm * D * 4)                   # f32 accumulator scratch
    # Headroom, but never request more than v7x's 64 MiB physical VMEM.
    vmem_limit = min(64 * 1024 * 1024,
                     max(16 * 1024 * 1024, int(1.5 * vmem_needed)))

    cost = pl.CostEstimate(
        flops=4 * M * D * F_dim,        # two MXU matmuls
        transcendentals=0,
        bytes_accessed=((x2d.size + m_pad * D) * x_bytes
                        + (w1.size + w2.size + b1.size + b2.size) * w_bytes))

    out2d = pl.pallas_call(
        _ffn_kernel,
        out_shape=jax.ShapeDtypeStruct((m_pad, D), x.dtype),
        grid_spec=pltpu.PrefetchScalarGridSpec(
            num_scalar_prefetch=0,
            grid=grid,
            in_specs=[
                # x row-tile: block index invariant in f -> stays resident
                # across the whole F reduction for a given row tile.
                pl.BlockSpec((tm, D), lambda i, f: (i, 0)),
                # W1 / b1 / W2 streamed per F-tile (double-buffered so the next
                # weight slab DMAs while the MXU works on the current one).
                pl.BlockSpec((D, tf), lambda i, f: (0, f)),
                pl.BlockSpec((1, tf), lambda i, f: (0, f)),
                pl.BlockSpec((tf, D), lambda i, f: (f, 0)),
                # b2: grid-invariant, tiny.
                pl.BlockSpec((1, D), lambda i, f: (0, 0)),
            ],
            # Output tile revisited across the F (reduction) axis.
            out_specs=pl.BlockSpec((tm, D), lambda i, f: (i, 0)),
            scratch_shapes=[pltpu.VMEM((tm, D), jnp.float32)],
        ),
        compiler_params=pltpu.CompilerParams(
            dimension_semantics=("parallel", "arbitrary"),
            vmem_limit_bytes=vmem_limit),
        cost_estimate=cost,
    )(x2d, w1, b1_2d, w2, b2_2d)

    return out2d[:M].reshape(B, S, D)


def _reference(x, w1, b1, w2, b2):
    hp = jax.lax.Precision.HIGHEST
    h = jnp.maximum(jnp.einsum("bsd,df->bsf", x, w1, precision=hp) + b1, 0.0)
    return jnp.einsum("bsf,fd->bsd", h, w2, precision=hp) + b2


if __name__ == "__main__":
    # Small but lane/sublane-friendly shapes: model_dim is a multiple of 128
    # (lane-dense stores), fc_dim=1024 exercises two F tiles (accumulation path),
    # and B*S=400 exercises the ragged-M padding path (2 row tiles of 256).
    B, S, model_dim, fc_dim = 2, 200, 128, 1024

    key = jax.random.PRNGKey(0)
    kx, kw1, kb1, kw2, kb2 = jax.random.split(key, 5)

    x = jax.random.normal(kx, (B, S, model_dim), dtype=jnp.float32)
    # Deterministic param init (matches nn.Linear shapes, stored as [in, out]).
    w1 = jax.random.normal(kw1, (model_dim, fc_dim), dtype=jnp.float32) * 0.05
    b1 = jax.random.normal(kb1, (fc_dim,), dtype=jnp.float32) * 0.05
    w2 = jax.random.normal(kw2, (fc_dim, model_dim), dtype=jnp.float32) * 0.05
    b2 = jax.random.normal(kb2, (model_dim,), dtype=jnp.float32) * 0.05

    out = position_wise_fc(x, w1, b1, w2, b2, block_m=256, block_f=512)
    out = jax.block_until_ready(out)

    ref = _reference(x, w1, b1, w2, b2)
    assert out.shape == (B, S, model_dim)
    max_err = float(jnp.max(jnp.abs(out - ref)))
    assert jnp.allclose(out, ref, atol=1e-3, rtol=1e-3), max_err

    print("KERNEL_OK")
</pallas_src>

<mosaic_0001>
module attributes {stable_mosaic.version = 11 : i64} {
  func.func @_ffn_kernel(%arg0: i32, %arg1: i32, %arg2: memref<256x128xf32, #tpu.memory_space<vmem>>, %arg3: memref<128x512xf32, #tpu.memory_space<vmem>>, %arg4: memref<1x512xf32, #tpu.memory_space<vmem>>, %arg5: memref<512x128xf32, #tpu.memory_space<vmem>>, %arg6: memref<1x128xf32, #tpu.memory_space<vmem>>, %arg7: memref<256x128xf32, #tpu.memory_space<vmem>>, %arg8: memref<256x128xf32, #tpu.memory_space<vmem>>) attributes {dimension_semantics = [#tpu.dimension_semantics<parallel>, #tpu.dimension_semantics<arbitrary>], iteration_bounds = array<i64: 2, 2>, scalar_prefetch = 0 : i64, scratch_operands = 1 : i64, tpu.core_type = #tpu.core_type<tc>, window_params = [{transform_indices = @transform_0, window_bounds = array<i64: 256, 128>}, {transform_indices = @transform_1, window_bounds = array<i64: 128, 512>}, {transform_indices = @transform_2, window_bounds = array<i64: 1, 512>}, {transform_indices = @transform_3, window_bounds = array<i64: 512, 128>}, {pipeline_mode = #tpu.pipeline_mode<synchronous>, transform_indices = @transform_4, window_bounds = array<i64: 1, 128>}, {transform_indices = @transform_5, window_bounds = array<i64: 256, 128>}]} {
    %c0_i32 = arith.constant 0 : i32
    %0 = arith.cmpi eq, %arg1, %c0_i32 : i32
    %1 = arith.extui %0 : i1 to i32
    %c0_i32_0 = arith.constant 0 : i32
    %2 = arith.cmpi ne, %1, %c0_i32_0 : i32
    scf.if %2 {
      %cst_15 = arith.constant 0.000000e+00 : f32
      %19 = vector.broadcast %cst_15 : f32 to vector<256x128xf32>
      %c0_16 = arith.constant 0 : index
      %c0_17 = arith.constant 0 : index
      %20 = vector.load %arg8[%c0_16, %c0_17] : memref<256x128xf32, #tpu.memory_space<vmem>>, vector<256x128xf32>
      tpu.vector_store %arg8[%c0_16, %c0_17], %19 {strides = array<i32>} : memref<256x128xf32, #tpu.memory_space<vmem>>, vector<256x128xf32>,
    } else {
    }
    %c0 = arith.constant 0 : index
    %c0_1 = arith.constant 0 : index
    %3 = vector.load %arg2[%c0, %c0_1] : memref<256x128xf32, #tpu.memory_space<vmem>>, vector<256x128xf32>
    %c0_2 = arith.constant 0 : index
    %c0_3 = arith.constant 0 : index
    %4 = vector.load %arg3[%c0_2, %c0_3] : memref<128x512xf32, #tpu.memory_space<vmem>>, vector<128x512xf32>
    %cst = arith.constant dense<0.000000e+00> : vector<256x512xf32>
    %5 = tpu.matmul %3, %4, %cst {dimension_numbers = #tpu.dot_dimension_numbers<[1], [0], [0], [1], [0, 0, 1, 1], [], []>} : vector<256x128xf32>, vector<128x512xf32>, vector<256x512xf32> -> vector<256x512xf32>
    %c0_4 = arith.constant 0 : index
    %c0_5 = arith.constant 0 : index
    %6 = vector.load %arg4[%c0_4, %c0_5] : memref<1x512xf32, #tpu.memory_space<vmem>>, vector<1x512xf32>
    %7 = vector.broadcast %6 : vector<1x512xf32> to vector<256x512xf32>
    %8 = arith.addf %5, %7 : vector<256x512xf32>
    %cst_6 = arith.constant 0.000000e+00 : f32
    %9 = vector.broadcast %cst_6 : f32 to vector<256x512xf32>
    %10 = arith.maximumf %8, %9 : vector<256x512xf32>
    %c0_7 = arith.constant 0 : index
    %c0_8 = arith.constant 0 : index
    %11 = vector.load %arg8[%c0_7, %c0_8] : memref<256x128xf32, #tpu.memory_space<vmem>>, vector<256x128xf32>
    %c0_9 = arith.constant 0 : index
    %c0_10 = arith.constant 0 : index
    %12 = vector.load %arg5[%c0_9, %c0_10] : memref<512x128xf32, #tpu.memory_space<vmem>>, vector<512x128xf32>
    %cst_11 = arith.constant dense<0.000000e+00> : vector<256x128xf32>
    %13 = tpu.matmul %10, %12, %cst_11 {dimension_numbers = #tpu.dot_dimension_numbers<[1], [0], [0], [1], [0, 0, 1, 1], [], []>} : vector<256x512xf32>, vector<512x128xf32>, vector<256x128xf32> -> vector<256x128xf32>
    %14 = arith.addf %11, %13 : vector<256x128xf32>
    %c0_12 = arith.constant 0 : index
    %c0_13 = arith.constant 0 : index
    %15 = vector.load %arg8[%c0_12, %c0_13] : memref<256x128xf32, #tpu.memory_space<vmem>>, vector<256x128xf32>
    tpu.vector_store %arg8[%c0_12, %c0_13], %14 {strides = array<i32>} : memref<256x128xf32, #tpu.memory_space<vmem>>, vector<256x128xf32>,
    %c1_i32 = arith.constant 1 : i32
    %16 = arith.cmpi eq, %arg1, %c1_i32 : i32
    %17 = arith.extui %16 : i1 to i32
    %c0_i32_14 = arith.constant 0 : i32
    %18 = arith.cmpi ne, %17, %c0_i32_14 : i32
    scf.if %18 {
      %c0_15 = arith.constant 0 : index
      %c0_16 = arith.constant 0 : index
      %19 = vector.load %arg8[%c0_15, %c0_16] : memref<256x128xf32, #tpu.memory_space<vmem>>, vector<256x128xf32>
      %c0_17 = arith.constant 0 : index
      %c0_18 = arith.constant 0 : index
      %20 = vector.load %arg6[%c0_17, %c0_18] : memref<1x128xf32, #tpu.memory_space<vmem>>, vector<1x128xf32>
      %21 = vector.broadcast %20 : vector<1x128xf32> to vector<256x128xf32>
      %22 = arith.addf %19, %21 : vector<256x128xf32>
      %c0_19 = arith.constant 0 : index
      %c0_20 = arith.constant 0 : index
      %23 = vector.load %arg7[%c0_19, %c0_20] : memref<256x128xf32, #tpu.memory_space<vmem>>, vector<256x128xf32>
      tpu.vector_store %arg7[%c0_19, %c0_20], %22 {strides = array<i32>} : memref<256x128xf32, #tpu.memory_space<vmem>>, vector<256x128xf32>,
    } else {
    }
    return
  }
  func.func @transform_0(%arg0: i32, %arg1: i32) -> (i32, i32) {
    %c0_i32 = arith.constant 0 : i32
    %c0_i32_0 = arith.constant 0 : i32
    return %arg0, %c0_i32 : i32, i32
  }
  func.func @transform_1(%arg0: i32, %arg1: i32) -> (i32, i32) {
    %c0_i32 = arith.constant 0 : i32
    %c0_i32_0 = arith.constant 0 : i32
    return %c0_i32, %arg1 : i32, i32
  }
  func.func @transform_2(%arg0: i32, %arg1: i32) -> (i32, i32) {
    %c0_i32 = arith.constant 0 : i32
    %c0_i32_0 = arith.constant 0 : i32
    return %c0_i32, %arg1 : i32, i32
  }
  func.func @transform_3(%arg0: i32, %arg1: i32) -> (i32, i32) {
    %c0_i32 = arith.constant 0 : i32
    %c0_i32_0 = arith.constant 0 : i32
    return %arg1, %c0_i32 : i32, i32
  }
  func.func @transform_4(%arg0: i32, %arg1: i32) -> (i32, i32) {
    %c0_i32 = arith.constant 0 : i32
    %c0_i32_0 = arith.constant 0 : i32
    %c0_i32_1 = arith.constant 0 : i32
    return %c0_i32, %c0_i32_0 : i32, i32
  }
  func.func @transform_5(%arg0: i32, %arg1: i32) -> (i32, i32) {
    %c0_i32 = arith.constant 0 : i32
    %c0_i32_0 = arith.constant 0 : i32
    return %arg0, %c0_i32 : i32, i32
  }
}

</mosaic_0001>

<llo_original>
// kernel: position_wise_fc.1
$region0: #{position_wise_fc.1}
  #allocation0 [shape = 'u32[]', space=smem, size = 0x4, offset = 0x4, fixed_abs, tag = 'smem constant byte address 0x4 - core index']
  #allocation1 [shape = 'u32[72,128]{1,0:T(1,128)}', space=vmem, size = 0x9000, scoped, tag = 'internal scratch']
  #allocation2 [shape = 'f32[256,128]{1,0:T(8,128)}', space=vmem, size = 0x20000, scoped, tag = 'scratch operand']
  %s0 = inlined_call_operand.vmem [shape: f32[512,128], index: 0, kind: input, shape index: {}]
  %s1 = inlined_call_operand.hbm [shape: f32[128,1024], index: 1, kind: input, shape index: {}]
  %s2 = inlined_call_operand.vmem [shape: f32[1,1024], index: 2, kind: input, shape index: {}]
  %s3 = inlined_call_operand.hbm [shape: f32[1024,128], index: 3, kind: input, shape index: {}]
  %s4 = inlined_call_operand.vmem [shape: f32[1,128], index: 4, kind: input, shape index: {}]
  %s5 = inlined_call_operand.vmem [shape: f32[512,128], index: 5, kind: output, shape index: {}]
  %s6 = sld [smem:[#allocation0]]
  $region69: #{position_wise_fc.1} parent=0
    _
  %s8 = ssub.s32 1, %s6
  %s9 = scalar_select 0, %s8, %s6
  $region1: #{position_wise_fc.1} parent=0
    #allocation3 [shape = 'u8[524288]{0}', space=vmem, size = 0x80000, scoped, tag = 'input window, operand 1']
    #allocation4 [shape = 's32[2]{0}', space=sflag, size = 0x8, scoped, tag = 'scoped memory for position_wise_fc.1']
    #allocation5 [shape = 'u8[524288]{0}', space=vmem, size = 0x80000, scoped, tag = 'input window, operand 3']
    #allocation6 [shape = 's32[2]{0}', space=sflag, size = 0x8, scoped, tag = 'scoped memory for position_wise_fc.1']
    %10 = vsyncpa [#allocation4], 0
    %s11 = scalar_lea.sflag [#allocation4], 1
    %12 = vsyncpa %s11, 0
    %13 = vsyncpa [#allocation6], 0
    %s14 = scalar_lea.sflag [#allocation6], 1
    %15 = vsyncpa %s14, 0
    loop: start=0, step=1, limit=6
    $region2: #{position_wise_fc.1} parent=1 // loop_pre_header
      _
    $region3: #{position_wise_fc.1} parent=1 // loop_header
      %s17 = sphi 0, %s21
      %p18 = scmp.ge.s32.totalorder %s17, 6
      %s24 = sphi 0, %s36
      %s25 = sphi 0, %s32
      %s26 = sphi 0, %s24
      %s27 = sphi 0, %s25
      %s28 = sphi 0, %s26
      %s29 = sphi 0, %s27
      %s39 = sphi 0, %s41
      %s42 = sphi 0, %s39
      %s43 = sphi 0, %s42
      %s59 = sphi 0, %s43
      %s65 = sphi 0, %s67
      %s68 = sphi 0, %s65
      %s69 = sphi 0, %s68
      %s85 = sphi 0, %s69
      %s91 = sphi 0, %s93
      %s94 = sphi 0, %s91
      %s95 = sphi 0, %s94
      %s111 = sphi 0, %s95
      %s117 = sphi 0, %s119
      %s120 = sphi 0, %s117
      %s121 = sphi 0, %s120
      %s137 = sphi 0, %s121
      %s141 = sphi 0, %s141
      %s143 = sphi 0, %s141
      %s144 = sphi 0, %s143
      %s158 = sphi 0, %s144
      %s164 = sphi 0, %s166
      %s167 = sphi 0, %s164
      %s168 = sphi 0, %s167
      %s184 = sphi 0, %s168
    $region4: #{position_wise_fc.1} parent=1 // loop_header_branch
      %20 = sbr.rel (%p18) target = $region8
    $region5: #{position_wise_fc.1} parent=1 // loop_body
      %s22 = ssub.s32 %s17, 1
      %s23 = ssub.s32 %s17, 2
      %s30 = sadd.s32 1, %s25
      %p31 = scmp.ge.s32.totalorder %s30, 2
      %s32 = scalar_select %p31, 0, %s30
      %s33 = sadd.s32 1, %s24
      %s34 = scalar_select %p31, %s33, %s24
      %p35 = scmp.ge.s32.totalorder %s34, 2
      %s36 = scalar_select %p35, 0, %s34
      %s37 = ssub.s32 %s24, %s36
      %p38 = scmp.eq.s32.totalorder %s37, 0
      %s40 = sadd.s32 %s39, 1
      %s41 = scalar_select %p38, %s39, %s40
      %p44 = pneg %p38
      %p45 = scmp.eq.s32.totalorder %s17, 3
      %p46 = por %p44, %p45
      %p47 = scmp.ne.s32.totalorder %s39, %s42
      %p48 = scmp.eq.s32.totalorder %s17, 0
      %p49 = por %p47, %p48
      %p50 = scmp.ne.s32.totalorder %s39, %s42
      %p51 = scmp.eq.s32.totalorder %s22, 3
      %p52 = por %p50, %p51
      %p53 = scmp.ne.s32.totalorder %s42, %s43
      %p54 = scmp.eq.s32.totalorder %s22, 0
      %p55 = por %p53, %p54
      %p56 = scmp.ne.s32.totalorder %s42, %s43
      %p57 = scmp.eq.s32.totalorder %s23, 3
      %p58 = por %p56, %p57
      %p60 = scmp.ne.s32.totalorder %s43, %s59
      %p61 = scmp.eq.s32.totalorder %s23, 0
      %p62 = por %p60, %p61
      %s63 = ssub.s32 %s25, %s32
      %p64 = scmp.eq.s32.totalorder %s63, 0
      %s66 = sadd.s32 %s65, 1
      %s67 = scalar_select %p64, %s65, %s66
      %p70 = pneg %p64
      %p71 = scmp.eq.s32.totalorder %s17, 3
      %p72 = por %p70, %p71
      %p73 = scmp.ne.s32.totalorder %s65, %s68
      %p74 = scmp.eq.s32.totalorder %s17, 0
      %p75 = por %p73, %p74
      %p76 = scmp.ne.s32.totalorder %s65, %s68
      %p77 = scmp.eq.s32.totalorder %s22, 3
      %p78 = por %p76, %p77
      %p79 = scmp.ne.s32.totalorder %s68, %s69
      %p80 = scmp.eq.s32.totalorder %s22, 0
      %p81 = por %p79, %p80
      %p82 = scmp.ne.s32.totalorder %s68, %s69
      %p83 = scmp.eq.s32.totalorder %s23, 3
      %p84 = por %p82, %p83
      %p86 = scmp.ne.s32.totalorder %s69, %s85
      %p87 = scmp.eq.s32.totalorder %s23, 0
      %p88 = por %p86, %p87
      %s89 = ssub.s32 %s25, %s32
      %p90 = scmp.eq.s32.totalorder %s89, 0
      %s92 = sadd.s32 %s91, 1
      %s93 = scalar_select %p90, %s91, %s92
      %p96 = pneg %p90
      %p97 = scmp.eq.s32.totalorder %s17, 3
      %p98 = por %p96, %p97
      %p99 = scmp.ne.s32.totalorder %s91, %s94
      %p100 = scmp.eq.s32.totalorder %s17, 0
      %p101 = por %p99, %p100
      %p102 = scmp.ne.s32.totalorder %s91, %s94
      %p103 = scmp.eq.s32.totalorder %s22, 3
      %p104 = por %p102, %p103
      %p105 = scmp.ne.s32.totalorder %s94, %s95
      %p106 = scmp.eq.s32.totalorder %s22, 0
      %p107 = por %p105, %p106
      %p108 = scmp.ne.s32.totalorder %s94, %s95
      %p109 = scmp.eq.s32.totalorder %s23, 3
      %p110 = por %p108, %p109
      %p112 = scmp.ne.s32.totalorder %s95, %s111
      %p113 = scmp.eq.s32.totalorder %s23, 0
      %p114 = por %p112, %p113
      %s115 = ssub.s32 %s25, %s32
      %p116 = scmp.eq.s32.totalorder %s115, 0
      %s118 = sadd.s32 %s117, 1
      %s119 = scalar_select %p116, %s117, %s118
      %p122 = pneg %p116
      %p123 = scmp.eq.s32.totalorder %s17, 3
      %p124 = por %p122, %p123
      %p125 = scmp.ne.s32.totalorder %s117, %s120
      %p126 = scmp.eq.s32.totalorder %s17, 0
      %p127 = por %p125, %p126
      %p128 = scmp.ne.s32.totalorder %s117, %s120
      %p129 = scmp.eq.s32.totalorder %s22, 3
      %p130 = por %p128, %p129
      %p131 = scmp.ne.s32.totalorder %s120, %s121
      %p132 = scmp.eq.s32.totalorder %s22, 0
      %p133 = por %p131, %p132
      %p134 = scmp.ne.s32.totalorder %s120, %s121
      %p135 = scmp.eq.s32.totalorder %s23, 3
      %p136 = por %p134, %p135
      %p138 = scmp.ne.s32.totalorder %s121, %s137
      %p139 = scmp.eq.s32.totalorder %s23, 0
      %p140 = por %p138, %p139
      %s142 = sadd.s32 %s141, 1
      %p145 = scmp.eq.s32.totalorder %s17, 3
      %p146 = scmp.ne.s32.totalorder %s141, %s143
      %p147 = scmp.eq.s32.totalorder %s17, 0
      %p148 = por %p146, %p147
      %p149 = scmp.ne.s32.totalorder %s141, %s143
      %p150 = scmp.eq.s32.totalorder %s22, 3
      %p151 = por %p149, %p150
      %p152 = scmp.ne.s32.totalorder %s143, %s144
      %p153 = scmp.eq.s32.totalorder %s22, 0
      %p154 = por %p152, %p153
      %p155 = scmp.ne.s32.totalorder %s143, %s144
      %p156 = scmp.eq.s32.totalorder %s23, 3
      %p157 = por %p155, %p156
      %p159 = scmp.ne.s32.totalorder %s144, %s158
      %p160 = scmp.eq.s32.totalorder %s23, 0
      %p161 = por %p159, %p160
      %s162 = ssub.s32 %s24, %s36
      %p163 = scmp.eq.s32.totalorder %s162, 0
      %s165 = sadd.s32 %s164, 1
      %s166 = scalar_select %p163, %s164, %s165
      %p169 = pneg %p163
      %p170 = scmp.eq.s32.totalorder %s17, 3
      %p171 = por %p169, %p170
      %p172 = scmp.ne.s32.totalorder %s164, %s167
      %p173 = scmp.eq.s32.totalorder %s17, 0
      %p174 = por %p172, %p173
      %p175 = scmp.ne.s32.totalorder %s164, %s167
      %p176 = scmp.eq.s32.totalorder %s22, 3
      %p177 = por %p175, %p176
      %p178 = scmp.ne.s32.totalorder %s167, %s168
      %p179 = scmp.eq.s32.totalorder %s22, 0
      %p180 = por %p178, %p179
      %p181 = scmp.ne.s32.totalorder %s167, %s168
      %p182 = scmp.eq.s32.totalorder %s23, 3
      %p183 = por %p181, %p182
      %p185 = scmp.ne.s32.totalorder %s168, %s184
      %p186 = scmp.eq.s32.totalorder %s23, 0
      %p187 = por %p185, %p186
      %p188 = scmp.le.s32.totalorder 1, %s17
      %p189 = scmp.lt.s32.totalorder %s17, 5
      %p190 = pnand %p188, %p189
      %p191 = pneg %p190
      // Predicated region
      $region9: #{position_wise_fc.1} parent=5 // pred_check
        _
      $region10: #{position_wise_fc.1} parent=5 // pred_check_branch
        %193 = sbr.rel (%p190) target = $region12
      $region11: #{position_wise_fc.1} parent=5 // pred_region
        %s194 = ssub.s32 %s17, 1
        // Predicated region
        $region13: #{position_wise_fc.1} parent=11 // pred_check
          %p195 = pneg %p154
        $region14: #{position_wise_fc.1} parent=11 // pred_check_branch
          %197 = sbr.rel (%p195) target = $region16
        $region15: #{position_wise_fc.1} parent=11 // pred_region
          _
        $region16: #{position_wise_fc.1} parent=11 // pred_fallthru
          _
      $region12: #{position_wise_fc.1} parent=5 // pred_fallthru
        _
      %p198 = scmp.lt.s32.totalorder %s17, 4
      // Predicated region
      $region17: #{position_wise_fc.1} parent=5 // pred_check
        %p199 = pneg %p198
      $region18: #{position_wise_fc.1} parent=5 // pred_check_branch
        %201 = sbr.rel (%p199) target = $region20
      $region19: #{position_wise_fc.1} parent=5 // pred_region
        // Predicated region
        $region21: #{position_wise_fc.1} parent=19 // pred_check
          %p202 = pneg %p49
        $region22: #{position_wise_fc.1} parent=19 // pred_check_branch
          %204 = sbr.rel (%p202) target = $region24
        $region23: #{position_wise_fc.1} parent=19 // pred_region
          %s205 = smul.u32 32, %s24
          %p206 = scmp.lt.s32.totalorder %s205, 63
          %s207 = scalar_select %p206, %s205, 63
          %s208 = smul.addr %s207, 8
          %s209 = scalar_lea.vmem %s0, %s208
          %s210 = smul.u32 32, %s24
        $region24: #{position_wise_fc.1} parent=19 // pred_fallthru
          _
        // Predicated region
        $region25: #{position_wise_fc.1} parent=19 // pred_check
          %p211 = pneg %p75
        $region26: #{position_wise_fc.1} parent=19 // pred_check_branch
          %213 = sbr.rel (%p211) target = $region28
        $region27: #{position_wise_fc.1} parent=19 // pred_region
          %s214 = sand.u32 %s65, 1
          %s215 = scalar_lea.sflag [#allocation4], %s214
          %s216 = sand.u32 %s65, 1
          %s217 = smul.addr %s216, 512
          %s218 = scalar_lea.vmem [#allocation3], %s217
          %s219 = smul.u32 4, %s25
          %221 = vsyncadd %s215, 0
          %s222 = smul.addr %s219, 8
          %s223 = scalar_lea.hbm %s1, %s222
          %s224 = sshll.u32 %s223, 4
          %s225 = int_to_ptr.hbm [resolvable:$true] %s224
          %s226 = sshll.u32 %s218, 4
          %s227 = int_to_ptr.vmem [resolvable:$true] %s226
          %232 = dma.hbm_to_vmem [thread:$0]  %s225, 8192, %s227, %s215, 1024, 512, 32
        $region28: #{position_wise_fc.1} parent=19 // pred_fallthru
          _
        // Predicated region
        $region29: #{position_wise_fc.1} parent=19 // pred_check
          %p233 = pneg %p101
        $region30: #{position_wise_fc.1} parent=19 // pred_check_branch
          %235 = sbr.rel (%p233) target = $region32
        $region31: #{position_wise_fc.1} parent=19 // pred_region
          %s236 = smul.u32 4, %s25
          %p237 = scmp.lt.s32.totalorder %s236, 7
          %s238 = scalar_select %p237, %s236, 7
          %s239 = scalar_lea.vmem %s2, %s238
          %s240 = smul.u32 4, %s25
        $region32: #{position_wise_fc.1} parent=19 // pred_fallthru
          _
        // Predicated region
        $region33: #{position_wise_fc.1} parent=19 // pred_check
          %p241 = pneg %p127
        $region34: #{position_wise_fc.1} parent=19 // pred_check_branch
          %243 = sbr.rel (%p241) target = $region36
        $region35: #{position_wise_fc.1} parent=19 // pred_region
          %s244 = sand.u32 %s117, 1
          %s245 = scalar_lea.sflag [#allocation6], %s244
          %s246 = sand.u32 %s117, 1
          %s247 = smul.addr %s246, 512
          %s248 = scalar_lea.vmem [#allocation5], %s247
          %s249 = smul.u32 64, %s25
          %251 = vsyncadd %s245, 0
          %s252 = smul.addr %s249, 8
          %s253 = scalar_lea.hbm %s3, %s252
          %s254 = sshll.u32 %s253, 4
          %s255 = int_to_ptr.hbm [resolvable:$true] %s254
          %s256 = sshll.u32 %s248, 4
          %s257 = int_to_ptr.vmem [resolvable:$true] %s256
          %262 = dma.hbm_to_vmem [thread:$0]  %s255, 8192, %s257, %s245, 128, 128, 8
        $region36: #{position_wise_fc.1} parent=19 // pred_fallthru
          _
      $region20: #{position_wise_fc.1} parent=5 // pred_fallthru
        _
      %p263 = scmp.le.s32.totalorder 1, %s17
      %p264 = scmp.lt.s32.totalorder %s17, 5
      %p265 = pnand %p263, %p264
      %p266 = pneg %p265
      // Predicated region
      $region37: #{position_wise_fc.1} parent=5 // pred_check
        _
      $region38: #{position_wise_fc.1} parent=5 // pred_check_branch
        %268 = sbr.rel (%p265) target = $region40
      $region39: #{position_wise_fc.1} parent=5 // pred_region
        %s269 = ssub.s32 %s17, 1
        %s270 = sand.u32 %s68, 1
        %s271 = scalar_lea.sflag [#allocation4], %s270
        %s272 = sand.u32 %s68, 1
        %s273 = smul.addr %s272, 512
        %s274 = scalar_lea.vmem [#allocation3], %s273
        // Predicated region
        $region41: #{position_wise_fc.1} parent=39 // pred_check
          %p275 = pneg %p81
        $region42: #{position_wise_fc.1} parent=39 // pred_check_branch
          %277 = sbr.rel (%p275) target = $region44
        $region43: #{position_wise_fc.1} parent=39 // pred_region
          %279 = dma.done %s271, 8192
        $region44: #{position_wise_fc.1} parent=39 // pred_fallthru
          _
        %s280 = sand.u32 %s120, 1
        %s281 = scalar_lea.sflag [#allocation6], %s280
        %s282 = sand.u32 %s120, 1
        %s283 = smul.addr %s282, 512
        %s284 = scalar_lea.vmem [#allocation5], %s283
        // Predicated region
        $region45: #{position_wise_fc.1} parent=39 // pred_check
          %p285 = pneg %p133
        $region46: #{position_wise_fc.1} parent=39 // pred_check_branch
          %287 = sbr.rel (%p285) target = $region48
        $region47: #{position_wise_fc.1} parent=39 // pred_region
          %289 = dma.done %s281, 8192
        $region48: #{position_wise_fc.1} parent=39 // pred_fallthru
          _
        %s290 = smul.u32 32, %s26
        %p291 = scmp.lt.s32.totalorder %s290, 63
        %s292 = scalar_select %p291, %s290, 63
        %s293 = smul.addr %s292, 8
        %s294 = scalar_lea.vmem %s0, %s293
        %p295 = pneg %p55
        %p296 = pneg %p52
        %s297 = sand.u32 %s68, 1
        %s298 = scalar_lea.sflag [#allocation4], %s297
        %s299 = sand.u32 %s68, 1
        %s300 = smul.addr %s299, 512
        %s301 = scalar_lea.vmem [#allocation3], %s300
        %p302 = pneg %p81
        %p303 = pneg %p78
        %s304 = smul.u32 4, %s27
        %p305 = scmp.lt.s32.totalorder %s304, 7
        %s306 = scalar_select %p305, %s304, 7
        %s307 = scalar_lea.vmem %s2, %s306
        %p308 = pneg %p107
        %p309 = pneg %p104
        %s310 = sand.u32 %s120, 1
        %s311 = scalar_lea.sflag [#allocation6], %s310
        %s312 = sand.u32 %s120, 1
        %s313 = smul.addr %s312, 512
        %s314 = scalar_lea.vmem [#allocation5], %s313
        %p315 = pneg %p133
        %p316 = pneg %p130
        %p317 = pneg %p154
        %p318 = pneg %p151
        %p319 = pneg %p180
        %p320 = pneg %p177
        %s321 = smul.u32 32, %s26
        %p322 = scmp.lt.s32.totalorder %s321, 63
        %s323 = scalar_select %p322, %s321, 63
        %s324 = smul.addr %s323, 8
        %s325 = scalar_lea.vmem %s5, %s324
        %s326 = smul.u32 32, %s26
        %p327 = scmp.lt.s32.totalorder %s326, 63
        %s328 = scalar_select %p327, %s326, 63
        %s329 = smul.addr %s328, 8
        %s330 = scalar_lea.vmem %s0, %s329
        %s331 = smul.u32 32, %s26
        %s332 = smul.u32 4, %s27
        %s333 = smul.u32 4, %s27
        %p334 = scmp.lt.s32.totalorder %s333, 7
        %s335 = scalar_select %p334, %s333, 7
        %s336 = scalar_lea.vmem %s2, %s335
        %s337 = smul.u32 4, %s27
        %s338 = smul.u32 64, %s27
        %s339 = smul.u32 32, %s26
        %p340 = scmp.lt.s32.totalorder %s339, 63
        %s341 = scalar_select %p340, %s339, 63
        %s342 = smul.addr %s341, 8
        %s343 = scalar_lea.vmem %s5, %s342
        %s344 = smul.u32 32, %s26
        %p345 = scmp.eq.s32.totalorder %s27, 0
        // Predicated region
        $region49: #{position_wise_fc.1} parent=39 // pred_check
          %p346 = pneg %p345
        $region50: #{position_wise_fc.1} parent=39 // pred_check_branch
          %348 = sbr.rel (%p346) target = $region52
        $region51: #{position_wise_fc.1} parent=39 // pred_region
          %349 = vst [vmem:[#allocation2] sm:$0xff] 0.0
          %350 = vst [vmem:[#allocation2 + $0x8] sm:$0xff] 0.0
          %351 = vst [vmem:[#allocation2 + $0x10] sm:$0xff] 0.0
          %352 = vst [vmem:[#allocation2 + $0x18] sm:$0xff] 0.0
          %353 = vst [vmem:[#allocation2 + $0x20] sm:$0xff] 0.0
          %354 = vst [vmem:[#allocation2 + $0x28] sm:$0xff] 0.0
          %355 = vst [vmem:[#allocation2 + $0x30] sm:$0xff] 0.0
          %356 = vst [vmem:[#allocation2 + $0x38] sm:$0xff] 0.0
          %357 = vst [vmem:[#allocation2 + $0x40] sm:$0xff] 0.0
          %358 = vst [vmem:[#allocation2 + $0x48] sm:$0xff] 0.0
          %359 = vst [vmem:[#allocation2 + $0x50] sm:$0xff] 0.0
          %360 = vst [vmem:[#allocation2 + $0x58] sm:$0xff] 0.0
          %361 = vst [vmem:[#allocation2 + $0x60] sm:$0xff] 0.0
          %362 = vst [vmem:[#allocation2 + $0x68] sm:$0xff] 0.0
          %363 = vst [vmem:[#allocation2 + $0x70] sm:$0xff] 0.0
          %364 = vst [vmem:[#allocation2 + $0x78] sm:$0xff] 0.0
          %365 = vst [vmem:[#allocation2 + $0x80] sm:$0xff] 0.0
          %366 = vst [vmem:[#allocation2 + $0x88] sm:$0xff] 0.0
          %367 = vst [vmem:[#allocation2 + $0x90] sm:$0xff] 0.0
          %368 = vst [vmem:[#allocation2 + $0x98] sm:$0xff] 0.0
          %369 = vst [vmem:[#allocation2 + $0xa0] sm:$0xff] 0.0
          %370 = vst [vmem:[#allocation2 + $0xa8] sm:$0xff] 0.0
          %371 = vst [vmem:[#allocation2 + $0xb0] sm:$0xff] 0.0
          %372 = vst [vmem:[#allocation2 + $0xb8] sm:$0xff] 0.0
          %373 = vst [vmem:[#allocation2 + $0xc0] sm:$0xff] 0.0
          %374 = vst [vmem:[#allocation2 + $0xc8] sm:$0xff] 0.0
          %375 = vst [vmem:[#allocation2 + $0xd0] sm:$0xff] 0.0
          %376 = vst [vmem:[#allocation2 + $0xd8] sm:$0xff] 0.0
          %377 = vst [vmem:[#allocation2 + $0xe0] sm:$0xff] 0.0
          %378 = vst [vmem:[#allocation2 + $0xe8] sm:$0xff] 0.0
          %379 = vst [vmem:[#allocation2 + $0xf0] sm:$0xff] 0.0
          %380 = vst [vmem:[#allocation2 + $0xf8] sm:$0xff] 0.0
        $region52: #{position_wise_fc.1} parent=39 // pred_fallthru
          _
        %v381 = vld [vmem:[%s330] sm:$0xff]
        %v382 = vld [vmem:[%s330 + $0x8] sm:$0xff]
        %v383 = vld [vmem:[%s330 + $0x10] sm:$0xff]
        %v384 = vld [vmem:[%s330 + $0x18] sm:$0xff]
        %v385 = vld [vmem:[%s330 + $0x20] sm:$0xff]
        %v386 = vld [vmem:[%s330 + $0x28] sm:$0xff]
        %v387 = vld [vmem:[%s330 + $0x30] sm:$0xff]
        %v388 = vld [vmem:[%s330 + $0x38] sm:$0xff]
        %v389 = vld [vmem:[%s330 + $0x40] sm:$0xff]
        %v390 = vld [vmem:[%s330 + $0x48] sm:$0xff]
        %v391 = vld [vmem:[%s330 + $0x50] sm:$0xff]
        %v392 = vld [vmem:[%s330 + $0x58] sm:$0xff]
        %v393 = vld [vmem:[%s330 + $0x60] sm:$0xff]
        %v394 = vld [vmem:[%s330 + $0x68] sm:$0xff]
        %v395 = vld [vmem:[%s330 + $0x70] sm:$0xff]
        %v396 = vld [vmem:[%s330 + $0x78] sm:$0xff]
        %v397 = vld [vmem:[%s330 + $0x80] sm:$0xff]
        %v398 = vld [vmem:[%s330 + $0x88] sm:$0xff]
        %v399 = vld [vmem:[%s330 + $0x90] sm:$0xff]
        %v400 = vld [vmem:[%s330 + $0x98] sm:$0xff]
        %v401 = vld [vmem:[%s330 + $0xa0] sm:$0xff]
        %v402 = vld [vmem:[%s330 + $0xa8] sm:$0xff]
        %v403 = vld [vmem:[%s330 + $0xb0] sm:$0xff]
        %v404 = vld [vmem:[%s330 + $0xb8] sm:$0xff]
        %v405 = vld [vmem:[%s330 + $0xc0] sm:$0xff]
        %v406 = vld [vmem:[%s330 + $0xc8] sm:$0xff]
        %v407 = vld [vmem:[%s330 + $0xd0] sm:$0xff]
        %v408 = vld [vmem:[%s330 + $0xd8] sm:$0xff]
        %v409 = vld [vmem:[%s330 + $0xe0] sm:$0xff]
        %v410 = vld [vmem:[%s330 + $0xe8] sm:$0xff]
        %v411 = vld [vmem:[%s330 + $0xf0] sm:$0xff]
        %v412 = vld [vmem:[%s330 + $0xf8] sm:$0xff]
        %v413 = vld [vmem:[%s274] sm:$0xff]
        %v414 = vld [vmem:[%s274 + $0x8] sm:$0xff]
        %v415 = vld [vmem:[%s274 + $0x10] sm:$0xff]
        %v416 = vld [vmem:[%s274 + $0x18] sm:$0xff]
        %v417 = vld [vmem:[%s274 + $0x20] sm:$0xff]
        %v418 = vld [vmem:[%s274 + $0x28] sm:$0xff]
        %v419 = vld [vmem:[%s274 + $0x30] sm:$0xff]
        %v420 = vld [vmem:[%s274 + $0x38] sm:$0xff]
        %v421 = vld [vmem:[%s274 + $0x40] sm:$0xff]
        %v422 = vld [vmem:[%s274 + $0x48] sm:$0xff]
        %v423 = vld [vmem:[%s274 + $0x50] sm:$0xff]
        %v424 = vld [vmem:[%s274 + $0x58] sm:$0xff]
        %v425 = vld [vmem:[%s274 + $0x60] sm:$0xff]
        %v426 = vld [vmem:[%s274 + $0x68] sm:$0xff]
        %v427 = vld [vmem:[%s274 + $0x70] sm:$0xff]
        %v428 = vld [vmem:[%s274 + $0x78] sm:$0xff]
        %v429 = vld [vmem:[%s274 + $0x80] sm:$0xff]
        %v430 = vld [vmem:[%s274 + $0x88] sm:$0xff]
        %v431 = vld [vmem:[%s274 + $0x90] sm:$0xff]
        %v432 = vld [vmem:[%s274 + $0x98] sm:$0xff]
        %v433 = vld [vmem:[%s274 + $0xa0] sm:$0xff]
        %v434 = vld [vmem:[%s274 + $0xa8] sm:$0xff]
        %v435 = vld [vmem:[%s274 + $0xb0] sm:$0xff]
        %v436 = vld [vmem:[%s274 + $0xb8] sm:$0xff]
        %v437 = vld [vmem:[%s274 + $0xc0] sm:$0xff]
        %v438 = vld [vmem:[%s274 + $0xc8] sm:$0xff]
        %v439 = vld [vmem:[%s274 + $0xd0] sm:$0xff]
        %v440 = vld [vmem:[%s274 + $0xd8] sm:$0xff]
        %v441 = vld [vmem:[%s274 + $0xe0] sm:$0xff]
        %v442 = vld [vmem:[%s274 + $0xe8] sm:$0xff]
        %v443 = vld [vmem:[%s274 + $0xf0] sm:$0xff]
        %v444 = vld [vmem:[%s274 + $0xf8] sm:$0xff]
        %v445 = vld [vmem:[%s274 + $0x100] sm:$0xff]
        %v446 = vld [vmem:[%s274 + $0x108] sm:$0xff]
        %v447 = vld [vmem:[%s274 + $0x110] sm:$0xff]
        %v448 = vld [vmem:[%s274 + $0x118] sm:$0xff]
        %v449 = vld [vmem:[%s274 + $0x120] sm:$0xff]
        %v450 = vld [vmem:[%s274 + $0x128] sm:$0xff]
        %v451 = vld [vmem:[%s274 + $0x130] sm:$0xff]
        %v452 = vld [vmem:[%s274 + $0x138] sm:$0xff]
        %v453 = vld [vmem:[%s274 + $0x140] sm:$0xff]
        %v454 = vld [vmem:[%s274 + $0x148] sm:$0xff]
        %v455 = vld [vmem:[%s274 + $0x150] sm:$0xff]
        %v456 = vld [vmem:[%s274 + $0x158] sm:$0xff]
        %v457 = vld [vmem:[%s274 + $0x160] sm:$0xff]
        %v458 = vld [vmem:[%s274 + $0x168] sm:$0xff]
        %v459 = vld [vmem:[%s274 + $0x170] sm:$0xff]
        %v460 = vld [vmem:[%s274 + $0x178] sm:$0xff]
        %v461 = vld [vmem:[%s274 + $0x180] sm:$0xff]
        %v462 = vld [vmem:[%s274 + $0x188] sm:$0xff]
        %v463 = vld [vmem:[%s274 + $0x190] sm:$0xff]
        %v464 = vld [vmem:[%s274 + $0x198] sm:$0xff]
        %v465 = vld [vmem:[%s274 + $0x1a0] sm:$0xff]
        %v466 = vld [vmem:[%s274 + $0x1a8] sm:$0xff]
        %v467 = vld [vmem:[%s274 + $0x1b0] sm:$0xff]
        %v468 = vld [vmem:[%s274 + $0x1b8] sm:$0xff]
        %v469 = vld [vmem:[%s274 + $0x1c0] sm:$0xff]
        %v470 = vld [vmem:[%s274 + $0x1c8] sm:$0xff]
        %v471 = vld [vmem:[%s274 + $0x1d0] sm:$0xff]
        %v472 = vld [vmem:[%s274 + $0x1d8] sm:$0xff]
        %v473 = vld [vmem:[%s274 + $0x1e0] sm:$0xff]
        %v474 = vld [vmem:[%s274 + $0x1e8] sm:$0xff]
        %v475 = vld [vmem:[%s274 + $0x1f0] sm:$0xff]
        %v476 = vld [vmem:[%s274 + $0x1f8] sm:$0xff]
        %v477 = vld [vmem:[%s336] sm:$0xf]
        %v479 = vperm.slane %v477, 0
        %v480 = vperm.slane %v477, 1
        %v481 = vperm.slane %v477, 2
        %v482 = vperm.slane %v477, 3
        %487 = vmatpush.msra.mxu0 %v473
        %488 = vmatpush.msra.mxu0 %v469
        %489 = vmatpush.msra.mxu0 %v465
        %490 = vmatpush.msra.mxu0 %v461
        %491 = vmatpush.msra.mxu0 %v457
        %492 = vmatpush.msra.mxu0 %v453
        %493 = vmatpush.msra.mxu0 %v449
        %494 = vmatpush.msra.mxu0 %v445
        %495 = vmatpush.msra.mxu0 %v441
        %496 = vmatpush.msra.mxu0 %v437
        %497 = vmatpush.msra.mxu0 %v433
        %498 = vmatpush.msra.mxu0 %v429
        %499 = vmatpush.msra.mxu0 %v425
        %500 = vmatpush.msra.mxu0 %v421
        %501 = vmatpush.msra.mxu0 %v417
        %502 = vmatpush.msra.mxu0 %v413
        %503 = vmatmul.f32.gmra.mxu0 %v381
        %v504 = vpop.f32.mrf.mxu0
        %v505 = vadd.f32 %v479, %v504
        %506 = vmatmul.f32.gmra.mxu0 %v382
        %v507 = vpop.f32.mrf.mxu0
        %v508 = vadd.f32 %v479, %v507
        %509 = vmatmul.f32.gmra.mxu0 %v383
        %v510 = vpop.f32.mrf.mxu0
        %v511 = vadd.f32 %v479, %v510
        %512 = vmatmul.f32.gmra.mxu0 %v384
        %v513 = vpop.f32.mrf.mxu0
        %v514 = vadd.f32 %v479, %v513
        %515 = vmatmul.f32.gmra.mxu0 %v385
        %v516 = vpop.f32.mrf.mxu0
        %v517 = vadd.f32 %v479, %v516
        %518 = vmatmul.f32.gmra.mxu0 %v386
        %v519 = vpop.f32.mrf.mxu0
        %v520 = vadd.f32 %v479, %v519
        %521 = vmatmul.f32.gmra.mxu0 %v387
        %v522 = vpop.f32.mrf.mxu0
        %v523 = vadd.f32 %v479, %v522
        %524 = vmatmul.f32.gmra.mxu0 %v388
        %v525 = vpop.f32.mrf.mxu0
        %v526 = vadd.f32 %v479, %v525
        %527 = vmatmul.f32.gmra.mxu0 %v389
        %v528 = vpop.f32.mrf.mxu0
        %v529 = vadd.f32 %v479, %v528
        %530 = vmatmul.f32.gmra.mxu0 %v390
        %v531 = vpop.f32.mrf.mxu0
        %v532 = vadd.f32 %v479, %v531
        %533 = vmatmul.f32.gmra.mxu0 %v391
        %v534 = vpop.f32.mrf.mxu0
        %v535 = vadd.f32 %v479, %v534
        %536 = vmatmul.f32.gmra.mxu0 %v392
        %v537 = vpop.f32.mrf.mxu0
        %v538 = vadd.f32 %v479, %v537
        %539 = vmatmul.f32.gmra.mxu0 %v393
        %v540 = vpop.f32.mrf.mxu0
        %v541 = vadd.f32 %v479, %v540
        %542 = vmatmul.f32.gmra.mxu0 %v394
        %v543 = vpop.f32.mrf.mxu0
        %v544 = vadd.f32 %v479, %v543
        %545 = vmatmul.f32.gmra.mxu0 %v395
        %v546 = vpop.f32.mrf.mxu0
        %v547 = vadd.f32 %v479, %v546
        %548 = vmatmul.f32.gmra.mxu0 %v396
        %v549 = vpop.f32.mrf.mxu0
        %v550 = vadd.f32 %v479, %v549
        %551 = vmatmul.f32.gmra.mxu0 %v397
        %v552 = vpop.f32.mrf.mxu0
        %v553 = vadd.f32 %v479, %v552
        %554 = vmatmul.f32.gmra.mxu0 %v398
        %v555 = vpop.f32.mrf.mxu0
        %v556 = vadd.f32 %v479, %v555
        %557 = vmatmul.f32.gmra.mxu0 %v399
        %v558 = vpop.f32.mrf.mxu0
        %v559 = vadd.f32 %v479, %v558
        %560 = vmatmul.f32.gmra.mxu0 %v400
        %v561 = vpop.f32.mrf.mxu0
        %v562 = vadd.f32 %v479, %v561
        %563 = vmatmul.f32.gmra.mxu0 %v401
        %v564 = vpop.f32.mrf.mxu0
        %v565 = vadd.f32 %v479, %v564
        %566 = vmatmul.f32.gmra.mxu0 %v402
        %v567 = vpop.f32.mrf.mxu0
        %v568 = vadd.f32 %v479, %v567
        %569 = vmatmul.f32.gmra.mxu0 %v403
        %v570 = vpop.f32.mrf.mxu0
        %v571 = vadd.f32 %v479, %v570
        %572 = vmatmul.f32.gmra.mxu0 %v404
        %v573 = vpop.f32.mrf.mxu0
        %v574 = vadd.f32 %v479, %v573
        %575 = vmatmul.f32.gmra.mxu0 %v405
        %v576 = vpop.f32.mrf.mxu0
        %v577 = vadd.f32 %v479, %v576
        %578 = vmatmul.f32.gmra.mxu0 %v406
        %v579 = vpop.f32.mrf.mxu0
        %v580 = vadd.f32 %v479, %v579
        %581 = vmatmul.f32.gmra.mxu0 %v407
        %v582 = vpop.f32.mrf.mxu0
        %v583 = vadd.f32 %v479, %v582
        %584 = vmatmul.f32.gmra.mxu0 %v408
        %v585 = vpop.f32.mrf.mxu0
        %v586 = vadd.f32 %v479, %v585
        %587 = vmatmul.f32.gmra.mxu0 %v409
        %v588 = vpop.f32.mrf.mxu0
        %v589 = vadd.f32 %v479, %v588
        %590 = vmatmul.f32.gmra.mxu0 %v410
        %v591 = vpop.f32.mrf.mxu0
        %v592 = vadd.f32 %v479, %v591
        %593 = vmatmul.f32.gmra.mxu0 %v411
        %v594 = vpop.f32.mrf.mxu0
        %v595 = vadd.f32 %v479, %v594
        %596 = vmatmul.f32.gmra.mxu0 %v412
        %v597 = vpop.f32.mrf.mxu0
        %v598 = vadd.f32 %v479, %v597
        %599 = vdwg.mxu0
        %600 = vmatpush.msra.mxu0 %v474
        %601 = vmatpush.msra.mxu0 %v470
        %602 = vmatpush.msra.mxu0 %v466
        %603 = vmatpush.msra.mxu0 %v462
        %604 = vmatpush.msra.mxu0 %v458
        %605 = vmatpush.msra.mxu0 %v454
        %606 = vmatpush.msra.mxu0 %v450
        %607 = vmatpush.msra.mxu0 %v446
        %608 = vmatpush.msra.mxu0 %v442
        %609 = vmatpush.msra.mxu0 %v438
        %610 = vmatpush.msra.mxu0 %v434
        %611 = vmatpush.msra.mxu0 %v430
        %612 = vmatpush.msra.mxu0 %v426
        %613 = vmatpush.msra.mxu0 %v422
        %614 = vmatpush.msra.mxu0 %v418
        %615 = vmatpush.msra.mxu0 %v414
        %616 = vmatmul.f32.gmra.mxu0 %v381
        %v617 = vpop.f32.mrf.mxu0
        %v618 = vadd.f32 %v480, %v617
        %619 = vmatmul.f32.gmra.mxu0 %v382
        %v620 = vpop.f32.mrf.mxu0
        %v621 = vadd.f32 %v480, %v620
        %622 = vmatmul.f32.gmra.mxu0 %v383
        %v623 = vpop.f32.mrf.mxu0
        %v624 = vadd.f32 %v480, %v623
        %625 = vmatmul.f32.gmra.mxu0 %v384
        %v626 = vpop.f32.mrf.mxu0
        %v627 = vadd.f32 %v480, %v626
        %628 = vmatmul.f32.gmra.mxu0 %v385
        %v629 = vpop.f32.mrf.mxu0
        %v630 = vadd.f32 %v480, %v629
        %631 = vmatmul.f32.gmra.mxu0 %v386
        %v632 = vpop.f32.mrf.mxu0
        %v633 = vadd.f32 %v480, %v632
        %634 = vmatmul.f32.gmra.mxu0 %v387
        %v635 = vpop.f32.mrf.mxu0
        %v636 = vadd.f32 %v480, %v635
        %637 = vmatmul.f32.gmra.mxu0 %v388
        %v638 = vpop.f32.mrf.mxu0
        %v639 = vadd.f32 %v480, %v638
        %640 = vmatmul.f32.gmra.mxu0 %v389
        %v641 = vpop.f32.mrf.mxu0
        %v642 = vadd.f32 %v480, %v641
        %643 = vmatmul.f32.gmra.mxu0 %v390
        %v644 = vpop.f32.mrf.mxu0
        %v645 = vadd.f32 %v480, %v644
        %646 = vmatmul.f32.gmra.mxu0 %v391
        %v647 = vpop.f32.mrf.mxu0
        %v648 = vadd.f32 %v480, %v647
        %649 = vmatmul.f32.gmra.mxu0 %v392
        %v650 = vpop.f32.mrf.mxu0
        %v651 = vadd.f32 %v480, %v650
        %652 = vmatmul.f32.gmra.mxu0 %v393
        %v653 = vpop.f32.mrf.mxu0
        %v654 = vadd.f32 %v480, %v653
        %655 = vmatmul.f32.gmra.mxu0 %v394
        %v656 = vpop.f32.mrf.mxu0
        %v657 = vadd.f32 %v480, %v656
        %658 = vmatmul.f32.gmra.mxu0 %v395
        %v659 = vpop.f32.mrf.mxu0
        %v660 = vadd.f32 %v480, %v659
        %661 = vmatmul.f32.gmra.mxu0 %v396
        %v662 = vpop.f32.mrf.mxu0
        %v663 = vadd.f32 %v480, %v662
        %664 = vmatmul.f32.gmra.mxu0 %v397
        %v665 = vpop.f32.mrf.mxu0
        %v666 = vadd.f32 %v480, %v665
        %667 = vmatmul.f32.gmra.mxu0 %v398
        %v668 = vpop.f32.mrf.mxu0
        %v669 = vadd.f32 %v480, %v668
        %670 = vmatmul.f32.gmra.mxu0 %v399
        %v671 = vpop.f32.mrf.mxu0
        %v672 = vadd.f32 %v480, %v671
        %673 = vmatmul.f32.gmra.mxu0 %v400
        %v674 = vpop.f32.mrf.mxu0
        %v675 = vadd.f32 %v480, %v674
        %676 = vmatmul.f32.gmra.mxu0 %v401
        %v677 = vpop.f32.mrf.mxu0
        %v678 = vadd.f32 %v480, %v677
        %679 = vmatmul.f32.gmra.mxu0 %v402
        %v680 = vpop.f32.mrf.mxu0
        %v681 = vadd.f32 %v480, %v680
        %682 = vmatmul.f32.gmra.mxu0 %v403
        %v683 = vpop.f32.mrf.mxu0
        %v684 = vadd.f32 %v480, %v683
        %685 = vmatmul.f32.gmra.mxu0 %v404
        %v686 = vpop.f32.mrf.mxu0
        %v687 = vadd.f32 %v480, %v686
        %688 = vmatmul.f32.gmra.mxu0 %v405
        %v689 = vpop.f32.mrf.mxu0
        %v690 = vadd.f32 %v480, %v689
        %691 = vmatmul.f32.gmra.mxu0 %v406
        %v692 = vpop.f32.mrf.mxu0
        %v693 = vadd.f32 %v480, %v692
        %694 = vmatmul.f32.gmra.mxu0 %v407
        %v695 = vpop.f32.mrf.mxu0
        %v696 = vadd.f32 %v480, %v695
        %697 = vmatmul.f32.gmra.mxu0 %v408
        %v698 = vpop.f32.mrf.mxu0
        %v699 = vadd.f32 %v480, %v698
        %700 = vmatmul.f32.gmra.mxu0 %v409
        %v701 = vpop.f32.mrf.mxu0
        %v702 = vadd.f32 %v480, %v701
        %703 = vmatmul.f32.gmra.mxu0 %v410
        %v704 = vpop.f32.mrf.mxu0
        %v705 = vadd.f32 %v480, %v704
        %706 = vmatmul.f32.gmra.mxu0 %v411
        %v707 = vpop.f32.mrf.mxu0
        %v708 = vadd.f32 %v480, %v707
        %709 = vmatmul.f32.gmra.mxu0 %v412
        %v710 = vpop.f32.mrf.mxu0
        %v711 = vadd.f32 %v480, %v710
        %712 = vdwg.mxu0
        %713 = vmatpush.msra.mxu0 %v475
        %714 = vmatpush.msra.mxu0 %v471
        %715 = vmatpush.msra.mxu0 %v467
        %716 = vmatpush.msra.mxu0 %v463
        %717 = vmatpush.msra.mxu0 %v459
        %718 = vmatpush.msra.mxu0 %v455
        %719 = vmatpush.msra.mxu0 %v451
        %720 = vmatpush.msra.mxu0 %v447
        %721 = vmatpush.msra.mxu0 %v443
        %722 = vmatpush.msra.mxu0 %v439
        %723 = vmatpush.msra.mxu0 %v435
        %724 = vmatpush.msra.mxu0 %v431
        %725 = vmatpush.msra.mxu0 %v427
        %726 = vmatpush.msra.mxu0 %v423
        %727 = vmatpush.msra.mxu0 %v419
        %728 = vmatpush.msra.mxu0 %v415
        %729 = vmatmul.f32.gmra.mxu0 %v381
        %v730 = vpop.f32.mrf.mxu0
        %v731 = vadd.f32 %v481, %v730
        %732 = vmatmul.f32.gmra.mxu0 %v382
        %v733 = vpop.f32.mrf.mxu0
        %v734 = vadd.f32 %v481, %v733
        %735 = vmatmul.f32.gmra.mxu0 %v383
        %v736 = vpop.f32.mrf.mxu0
        %v737 = vadd.f32 %v481, %v736
        %738 = vmatmul.f32.gmra.mxu0 %v384
        %v739 = vpop.f32.mrf.mxu0
        %v740 = vadd.f32 %v481, %v739
        %741 = vmatmul.f32.gmra.mxu0 %v385
        %v742 = vpop.f32.mrf.mxu0
        %v743 = vadd.f32 %v481, %v742
        %744 = vmatmul.f32.gmra.mxu0 %v386
        %v745 = vpop.f32.mrf.mxu0
        %v746 = vadd.f32 %v481, %v745
        %747 = vmatmul.f32.gmra.mxu0 %v387
        %v748 = vpop.f32.mrf.mxu0
        %v749 = vadd.f32 %v481, %v748
        %750 = vmatmul.f32.gmra.mxu0 %v388
        %v751 = vpop.f32.mrf.mxu0
        %v752 = vadd.f32 %v481, %v751
        %753 = vmatmul.f32.gmra.mxu0 %v389
        %v754 = vpop.f32.mrf.mxu0
        %v755 = vadd.f32 %v481, %v754
        %756 = vmatmul.f32.gmra.mxu0 %v390
        %v757 = vpop.f32.mrf.mxu0
        %v758 = vadd.f32 %v481, %v757
        %759 = vmatmul.f32.gmra.mxu0 %v391
        %v760 = vpop.f32.mrf.mxu0
        %v761 = vadd.f32 %v481, %v760
        %762 = vmatmul.f32.gmra.mxu0 %v392
        %v763 = vpop.f32.mrf.mxu0
        %v764 = vadd.f32 %v481, %v763
        %765 = vmatmul.f32.gmra.mxu0 %v393
        %v766 = vpop.f32.mrf.mxu0
        %v767 = vadd.f32 %v481, %v766
        %768 = vmatmul.f32.gmra.mxu0 %v394
        %v769 = vpop.f32.mrf.mxu0
        %v770 = vadd.f32 %v481, %v769
        %771 = vmatmul.f32.gmra.mxu0 %v395
        %v772 = vpop.f32.mrf.mxu0
        %v773 = vadd.f32 %v481, %v772
        %774 = vmatmul.f32.gmra.mxu0 %v396
        %v775 = vpop.f32.mrf.mxu0
        %v776 = vadd.f32 %v481, %v775
        %777 = vmatmul.f32.gmra.mxu0 %v397
        %v778 = vpop.f32.mrf.mxu0
        %v779 = vadd.f32 %v481, %v778
        %780 = vmatmul.f32.gmra.mxu0 %v398
        %v781 = vpop.f32.mrf.mxu0
        %v782 = vadd.f32 %v481, %v781
        %783 = vmatmul.f32.gmra.mxu0 %v399
        %v784 = vpop.f32.mrf.mxu0
        %v785 = vadd.f32 %v481, %v784
        %786 = vmatmul.f32.gmra.mxu0 %v400
        %v787 = vpop.f32.mrf.mxu0
        %v788 = vadd.f32 %v481, %v787
        %789 = vmatmul.f32.gmra.mxu0 %v401
        %v790 = vpop.f32.mrf.mxu0
        %v791 = vadd.f32 %v481, %v790
        %792 = vmatmul.f32.gmra.mxu0 %v402
        %v793 = vpop.f32.mrf.mxu0
        %v794 = vadd.f32 %v481, %v793
        %795 = vmatmul.f32.gmra.mxu0 %v403
        %v796 = vpop.f32.mrf.mxu0
        %v797 = vadd.f32 %v481, %v796
        %798 = vmatmul.f32.gmra.mxu0 %v404
        %v799 = vpop.f32.mrf.mxu0
        %v800 = vadd.f32 %v481, %v799
        %801 = vmatmul.f32.gmra.mxu0 %v405
        %v802 = vpop.f32.mrf.mxu0
        %v803 = vadd.f32 %v481, %v802
        %804 = vmatmul.f32.gmra.mxu0 %v406
        %v805 = vpop.f32.mrf.mxu0
        %v806 = vadd.f32 %v481, %v805
        %807 = vmatmul.f32.gmra.mxu0 %v407
        %v808 = vpop.f32.mrf.mxu0
        %v809 = vadd.f32 %v481, %v808
        %810 = vmatmul.f32.gmra.mxu0 %v408
        %v811 = vpop.f32.mrf.mxu0
        %v812 = vadd.f32 %v481, %v811
        %813 = vmatmul.f32.gmra.mxu0 %v409
        %v814 = vpop.f32.mrf.mxu0
        %v815 = vadd.f32 %v481, %v814
        %816 = vmatmul.f32.gmra.mxu0 %v410
        %v817 = vpop.f32.mrf.mxu0
        %v818 = vadd.f32 %v481, %v817
        %819 = vmatmul.f32.gmra.mxu0 %v411
        %v820 = vpop.f32.mrf.mxu0
        %v821 = vadd.f32 %v481, %v820
        %822 = vmatmul.f32.gmra.mxu0 %v412
        %v823 = vpop.f32.mrf.mxu0
        %v824 = vadd.f32 %v481, %v823
        %825 = vdwg.mxu0
        %826 = vmatpush.msra.mxu0 %v476
        %827 = vmatpush.msra.mxu0 %v472
        %828 = vmatpush.msra.mxu0 %v468
        %829 = vmatpush.msra.mxu0 %v464
        %830 = vmatpush.msra.mxu0 %v460
        %831 = vmatpush.msra.mxu0 %v456
        %832 = vmatpush.msra.mxu0 %v452
        %833 = vmatpush.msra.mxu0 %v448
        %834 = vmatpush.msra.mxu0 %v444
        %835 = vmatpush.msra.mxu0 %v440
        %836 = vmatpush.msra.mxu0 %v436
        %837 = vmatpush.msra.mxu0 %v432
        %838 = vmatpush.msra.mxu0 %v428
        %839 = vmatpush.msra.mxu0 %v424
        %840 = vmatpush.msra.mxu0 %v420
        %841 = vmatpush.msra.mxu0 %v416
        %842 = vmatmul.f32.gmra.mxu0 %v381
        %v843 = vpop.f32.mrf.mxu0
        %v844 = vadd.f32 %v482, %v843
        %845 = vmatmul.f32.gmra.mxu0 %v382
        %v846 = vpop.f32.mrf.mxu0
        %v847 = vadd.f32 %v482, %v846
        %848 = vmatmul.f32.gmra.mxu0 %v383
        %v849 = vpop.f32.mrf.mxu0
        %v850 = vadd.f32 %v482, %v849
        %851 = vmatmul.f32.gmra.mxu0 %v384
        %v852 = vpop.f32.mrf.mxu0
        %v853 = vadd.f32 %v482, %v852
        %854 = vmatmul.f32.gmra.mxu0 %v385
        %v855 = vpop.f32.mrf.mxu0
        %v856 = vadd.f32 %v482, %v855
        %857 = vmatmul.f32.gmra.mxu0 %v386
        %v858 = vpop.f32.mrf.mxu0
        %v859 = vadd.f32 %v482, %v858
        %860 = vmatmul.f32.gmra.mxu0 %v387
        %v861 = vpop.f32.mrf.mxu0
        %v862 = vadd.f32 %v482, %v861
        %863 = vmatmul.f32.gmra.mxu0 %v388
        %v864 = vpop.f32.mrf.mxu0
        %v865 = vadd.f32 %v482, %v864
        %866 = vmatmul.f32.gmra.mxu0 %v389
        %v867 = vpop.f32.mrf.mxu0
        %v868 = vadd.f32 %v482, %v867
        %869 = vmatmul.f32.gmra.mxu0 %v390
        %v870 = vpop.f32.mrf.mxu0
        %v871 = vadd.f32 %v482, %v870
        %872 = vmatmul.f32.gmra.mxu0 %v391
        %v873 = vpop.f32.mrf.mxu0
        %v874 = vadd.f32 %v482, %v873
        %875 = vmatmul.f32.gmra.mxu0 %v392
        %v876 = vpop.f32.mrf.mxu0
        %v877 = vadd.f32 %v482, %v876
        %878 = vmatmul.f32.gmra.mxu0 %v393
        %v879 = vpop.f32.mrf.mxu0
        %v880 = vadd.f32 %v482, %v879
        %881 = vmatmul.f32.gmra.mxu0 %v394
        %v882 = vpop.f32.mrf.mxu0
        %v883 = vadd.f32 %v482, %v882
        %884 = vmatmul.f32.gmra.mxu0 %v395
        %v885 = vpop.f32.mrf.mxu0
        %v886 = vadd.f32 %v482, %v885
        %887 = vmatmul.f32.gmra.mxu0 %v396
        %v888 = vpop.f32.mrf.mxu0
        %v889 = vadd.f32 %v482, %v888
        %890 = vmatmul.f32.gmra.mxu0 %v397
        %v891 = vpop.f32.mrf.mxu0
        %v892 = vadd.f32 %v482, %v891
        %893 = vmatmul.f32.gmra.mxu0 %v398
        %v894 = vpop.f32.mrf.mxu0
        %v895 = vadd.f32 %v482, %v894
        %896 = vmatmul.f32.gmra.mxu0 %v399
        %v897 = vpop.f32.mrf.mxu0
        %v898 = vadd.f32 %v482, %v897
        %899 = vmatmul.f32.gmra.mxu0 %v400
        %v900 = vpop.f32.mrf.mxu0
        %v901 = vadd.f32 %v482, %v900
        %902 = vmatmul.f32.gmra.mxu0 %v401
        %v903 = vpop.f32.mrf.mxu0
        %v904 = vadd.f32 %v482, %v903
        %905 = vmatmul.f32.gmra.mxu0 %v402
        %v906 = vpop.f32.mrf.mxu0
        %v907 = vadd.f32 %v482, %v906
        %908 = vmatmul.f32.gmra.mxu0 %v403
        %v909 = vpop.f32.mrf.mxu0
        %v910 = vadd.f32 %v482, %v909
        %911 = vmatmul.f32.gmra.mxu0 %v404
        %v912 = vpop.f32.mrf.mxu0
        %v913 = vadd.f32 %v482, %v912
        %914 = vmatmul.f32.gmra.mxu0 %v405
        %v915 = vpop.f32.mrf.mxu0
        %v916 = vadd.f32 %v482, %v915
        %917 = vmatmul.f32.gmra.mxu0 %v406
        %v918 = vpop.f32.mrf.mxu0
        %v919 = vadd.f32 %v482, %v918
        %920 = vmatmul.f32.gmra.mxu0 %v407
        %v921 = vpop.f32.mrf.mxu0
        %v922 = vadd.f32 %v482, %v921
        %923 = vmatmul.f32.gmra.mxu0 %v408
        %v924 = vpop.f32.mrf.mxu0
        %v925 = vadd.f32 %v482, %v924
        %926 = vmatmul.f32.gmra.mxu0 %v409
        %v927 = vpop.f32.mrf.mxu0
        %v928 = vadd.f32 %v482, %v927
        %929 = vmatmul.f32.gmra.mxu0 %v410
        %v930 = vpop.f32.mrf.mxu0
        %v931 = vadd.f32 %v482, %v930
        %932 = vmatmul.f32.gmra.mxu0 %v411
        %v933 = vpop.f32.mrf.mxu0
        %v934 = vadd.f32 %v482, %v933
        %935 = vmatmul.f32.gmra.mxu0 %v412
        %v936 = vpop.f32.mrf.mxu0
        %v937 = vadd.f32 %v482, %v936
        %938 = vdwg.mxu0
        %v939 = vmax.f32 %v505, 0.0
        %v940 = vmax.f32 %v618, 0.0
        %v941 = vmax.f32 %v731, 0.0
        %v942 = vmax.f32 %v844, 0.0
        %v943 = vmax.f32 %v508, 0.0
        %v944 = vmax.f32 %v621, 0.0
        %v945 = vmax.f32 %v734, 0.0
        %v946 = vmax.f32 %v847, 0.0
        %v947 = vmax.f32 %v511, 0.0
        %v948 = vmax.f32 %v624, 0.0
        %v949 = vmax.f32 %v737, 0.0
        %v950 = vmax.f32 %v850, 0.0
        %v951 = vmax.f32 %v514, 0.0
        %v952 = vmax.f32 %v627, 0.0
        %v953 = vmax.f32 %v740, 0.0
        %v954 = vmax.f32 %v853, 0.0
        %v955 = vmax.f32 %v517, 0.0
        %v956 = vmax.f32 %v630, 0.0
        %v957 = vmax.f32 %v743, 0.0
        %v958 = vmax.f32 %v856, 0.0
        %v959 = vmax.f32 %v520, 0.0
        %v960 = vmax.f32 %v633, 0.0
        %v961 = vmax.f32 %v746, 0.0
        %v962 = vmax.f32 %v859, 0.0
        %v963 = vmax.f32 %v523, 0.0
        %v964 = vmax.f32 %v636, 0.0
        %v965 = vmax.f32 %v749, 0.0
        %v966 = vmax.f32 %v862, 0.0
        %v967 = vmax.f32 %v526, 0.0
        %v968 = vmax.f32 %v639, 0.0
        %v969 = vmax.f32 %v752, 0.0
        %v970 = vmax.f32 %v865, 0.0
        %v971 = vmax.f32 %v529, 0.0
        %v972 = vmax.f32 %v642, 0.0
        %v973 = vmax.f32 %v755, 0.0
        %v974 = vmax.f32 %v868, 0.0
        %v975 = vmax.f32 %v532, 0.0
        %v976 = vmax.f32 %v645, 0.0
        %v977 = vmax.f32 %v758, 0.0
        %v978 = vmax.f32 %v871, 0.0
        %v979 = vmax.f32 %v535, 0.0
        %v980 = vmax.f32 %v648, 0.0
        %v981 = vmax.f32 %v761, 0.0
        %v982 = vmax.f32 %v874, 0.0
        %v983 = vmax.f32 %v538, 0.0
        %v984 = vmax.f32 %v651, 0.0
        %v985 = vmax.f32 %v764, 0.0
        %v986 = vmax.f32 %v877, 0.0
        %v987 = vmax.f32 %v541, 0.0
        %v988 = vmax.f32 %v654, 0.0
        %v989 = vmax.f32 %v767, 0.0
        %v990 = vmax.f32 %v880, 0.0
        %v991 = vmax.f32 %v544, 0.0
        %v992 = vmax.f32 %v657, 0.0
        %v993 = vmax.f32 %v770, 0.0
        %v994 = vmax.f32 %v883, 0.0
        %v995 = vmax.f32 %v547, 0.0
        %v996 = vmax.f32 %v660, 0.0
        %v997 = vmax.f32 %v773, 0.0
        %v998 = vmax.f32 %v886, 0.0
        %v999 = vmax.f32 %v550, 0.0
        %v1000 = vmax.f32 %v663, 0.0
        %v1001 = vmax.f32 %v776, 0.0
        %v1002 = vmax.f32 %v889, 0.0
        %v1003 = vmax.f32 %v553, 0.0
        %v1004 = vmax.f32 %v666, 0.0
        %v1005 = vmax.f32 %v779, 0.0
        %v1006 = vmax.f32 %v892, 0.0
        %v1007 = vmax.f32 %v556, 0.0
        %v1008 = vmax.f32 %v669, 0.0
        %v1009 = vmax.f32 %v782, 0.0
        %v1010 = vmax.f32 %v895, 0.0
        %v1011 = vmax.f32 %v559, 0.0
        %v1012 = vmax.f32 %v672, 0.0
        %v1013 = vmax.f32 %v785, 0.0
        %v1014 = vmax.f32 %v898, 0.0
        %v1015 = vmax.f32 %v562, 0.0
        %v1016 = vmax.f32 %v675, 0.0
        %v1017 = vmax.f32 %v788, 0.0
        %v1018 = vmax.f32 %v901, 0.0
        %v1019 = vmax.f32 %v565, 0.0
        %v1020 = vmax.f32 %v678, 0.0
        %v1021 = vmax.f32 %v791, 0.0
        %v1022 = vmax.f32 %v904, 0.0
        %v1023 = vmax.f32 %v568, 0.0
        %v1024 = vmax.f32 %v681, 0.0
        %v1025 = vmax.f32 %v794, 0.0
        %v1026 = vmax.f32 %v907, 0.0
        %v1027 = vmax.f32 %v571, 0.0
        %v1028 = vmax.f32 %v684, 0.0
        %v1029 = vmax.f32 %v797, 0.0
        %v1030 = vmax.f32 %v910, 0.0
        %v1031 = vmax.f32 %v574, 0.0
        %v1032 = vmax.f32 %v687, 0.0
        %v1033 = vmax.f32 %v800, 0.0
        %v1034 = vmax.f32 %v913, 0.0
        %v1035 = vmax.f32 %v577, 0.0
        %v1036 = vmax.f32 %v690, 0.0
        %v1037 = vmax.f32 %v803, 0.0
        %v1038 = vmax.f32 %v916, 0.0
        %v1039 = vmax.f32 %v580, 0.0
        %v1040 = vmax.f32 %v693, 0.0
        %v1041 = vmax.f32 %v806, 0.0
        %v1042 = vmax.f32 %v919, 0.0
        %v1043 = vmax.f32 %v583, 0.0
        %v1044 = vmax.f32 %v696, 0.0
        %v1045 = vmax.f32 %v809, 0.0
        %v1046 = vmax.f32 %v922, 0.0
        %v1047 = vmax.f32 %v586, 0.0
        %v1048 = vmax.f32 %v699, 0.0
        %v1049 = vmax.f32 %v812, 0.0
        %v1050 = vmax.f32 %v925, 0.0
        %v1051 = vmax.f32 %v589, 0.0
        %v1052 = vmax.f32 %v702, 0.0
        %v1053 = vmax.f32 %v815, 0.0
        %v1054 = vmax.f32 %v928, 0.0
        %v1055 = vmax.f32 %v592, 0.0
        %v1056 = vmax.f32 %v705, 0.0
        %v1057 = vmax.f32 %v818, 0.0
        %v1058 = vmax.f32 %v931, 0.0
        %v1059 = vmax.f32 %v595, 0.0
        %v1060 = vmax.f32 %v708, 0.0
        %v1061 = vmax.f32 %v821, 0.0
        %v1062 = vmax.f32 %v934, 0.0
        %v1063 = vmax.f32 %v598, 0.0
        %v1064 = vmax.f32 %v711, 0.0
        %v1065 = vmax.f32 %v824, 0.0
        %v1066 = vmax.f32 %v937, 0.0
        %v1067 = vld [vmem:[#allocation2] sm:$0xff]
        %v1068 = vld [vmem:[#allocation2 + $0x8] sm:$0xff]
        %v1069 = vld [vmem:[#allocation2 + $0x10] sm:$0xff]
        %v1070 = vld [vmem:[#allocation2 + $0x18] sm:$0xff]
        %v1071 = vld [vmem:[#allocation2 + $0x20] sm:$0xff]
        %v1072 = vld [vmem:[#allocation2 + $0x28] sm:$0xff]
        %v1073 = vld [vmem:[#allocation2 + $0x30] sm:$0xff]
        %v1074 = vld [vmem:[#allocation2 + $0x38] sm:$0xff]
        %v1075 = vld [vmem:[#allocation2 + $0x40] sm:$0xff]
        %v1076 = vld [vmem:[#allocation2 + $0x48] sm:$0xff]
        %v1077 = vld [vmem:[#allocation2 + $0x50] sm:$0xff]
        %v1078 = vld [vmem:[#allocation2 + $0x58] sm:$0xff]
        %v1079 = vld [vmem:[#allocation2 + $0x60] sm:$0xff]
        %v1080 = vld [vmem:[#allocation2 + $0x68] sm:$0xff]
        %v1081 = vld [vmem:[#allocation2 + $0x70] sm:$0xff]
        %v1082 = vld [vmem:[#allocation2 + $0x78] sm:$0xff]
        %v1083 = vld [vmem:[#allocation2 + $0x80] sm:$0xff]
        %v1084 = vld [vmem:[#allocation2 + $0x88] sm:$0xff]
        %v1085 = vld [vmem:[#allocation2 + $0x90] sm:$0xff]
        %v1086 = vld [vmem:[#allocation2 + $0x98] sm:$0xff]
        %v1087 = vld [vmem:[#allocation2 + $0xa0] sm:$0xff]
        %v1088 = vld [vmem:[#allocation2 + $0xa8] sm:$0xff]
        %v1089 = vld [vmem:[#allocation2 + $0xb0] sm:$0xff]
        %v1090 = vld [vmem:[#allocation2 + $0xb8] sm:$0xff]
        %v1091 = vld [vmem:[#allocation2 + $0xc0] sm:$0xff]
        %v1092 = vld [vmem:[#allocation2 + $0xc8] sm:$0xff]
        %v1093 = vld [vmem:[#allocation2 + $0xd0] sm:$0xff]
        %v1094 = vld [vmem:[#allocation2 + $0xd8] sm:$0xff]
        %v1095 = vld [vmem:[#allocation2 + $0xe0] sm:$0xff]
        %v1096 = vld [vmem:[#allocation2 + $0xe8] sm:$0xff]
        %v1097 = vld [vmem:[#allocation2 + $0xf0] sm:$0xff]
        %v1098 = vld [vmem:[#allocation2 + $0xf8] sm:$0xff]
        %v1099 = vld [vmem:[%s284] sm:$0xff]
        %v1100 = vld [vmem:[%s284 + $0x8] sm:$0xff]
        %v1101 = vld [vmem:[%s284 + $0x10] sm:$0xff]
        %v1102 = vld [vmem:[%s284 + $0x18] sm:$0xff]
        %v1103 = vld [vmem:[%s284 + $0x20] sm:$0xff]
        %v1104 = vld [vmem:[%s284 + $0x28] sm:$0xff]
        %v1105 = vld [vmem:[%s284 + $0x30] sm:$0xff]
        %v1106 = vld [vmem:[%s284 + $0x38] sm:$0xff]
        %v1107 = vld [vmem:[%s284 + $0x40] sm:$0xff]
        %v1108 = vld [vmem:[%s284 + $0x48] sm:$0xff]
        %v1109 = vld [vmem:[%s284 + $0x50] sm:$0xff]
        %v1110 = vld [vmem:[%s284 + $0x58] sm:$0xff]
        %v1111 = vld [vmem:[%s284 + $0x60] sm:$0xff]
        %v1112 = vld [vmem:[%s284 + $0x68] sm:$0xff]
        %v1113 = vld [vmem:[%s284 + $0x70] sm:$0xff]
        %v1114 = vld [vmem:[%s284 + $0x78] sm:$0xff]
        %v1115 = vld [vmem:[%s284 + $0x80] sm:$0xff]
        %v1116 = vld [vmem:[%s284 + $0x88] sm:$0xff]
        %v1117 = vld [vmem:[%s284 + $0x90] sm:$0xff]
        %v1118 = vld [vmem:[%s284 + $0x98] sm:$0xff]
        %v1119 = vld [vmem:[%s284 + $0xa0] sm:$0xff]
        %v1120 = vld [vmem:[%s284 + $0xa8] sm:$0xff]
        %v1121 = vld [vmem:[%s284 + $0xb0] sm:$0xff]
        %v1122 = vld [vmem:[%s284 + $0xb8] sm:$0xff]
        %v1123 = vld [vmem:[%s284 + $0xc0] sm:$0xff]
        %v1124 = vld [vmem:[%s284 + $0xc8] sm:$0xff]
        %v1125 = vld [vmem:[%s284 + $0xd0] sm:$0xff]
        %v1126 = vld [vmem:[%s284 + $0xd8] sm:$0xff]
        %v1127 = vld [vmem:[%s284 + $0xe0] sm:$0xff]
        %v1128 = vld [vmem:[%s284 + $0xe8] sm:$0xff]
        %v1129 = vld [vmem:[%s284 + $0xf0] sm:$0xff]
        %v1130 = vld [vmem:[%s284 + $0xf8] sm:$0xff]
        %v1131 = vld [vmem:[%s284 + $0x100] sm:$0xff]
        %v1132 = vld [vmem:[%s284 + $0x108] sm:$0xff]
        %v1133 = vld [vmem:[%s284 + $0x110] sm:$0xff]
        %v1134 = vld [vmem:[%s284 + $0x118] sm:$0xff]
        %v1135 = vld [vmem:[%s284 + $0x120] sm:$0xff]
        %v1136 = vld [vmem:[%s284 + $0x128] sm:$0xff]
        %v1137 = vld [vmem:[%s284 + $0x130] sm:$0xff]
        %v1138 = vld [vmem:[%s284 + $0x138] sm:$0xff]
        %v1139 = vld [vmem:[%s284 + $0x140] sm:$0xff]
        %v1140 = vld [vmem:[%s284 + $0x148] sm:$0xff]
        %v1141 = vld [vmem:[%s284 + $0x150] sm:$0xff]
        %v1142 = vld [vmem:[%s284 + $0x158] sm:$0xff]
        %v1143 = vld [vmem:[%s284 + $0x160] sm:$0xff]
        %v1144 = vld [vmem:[%s284 + $0x168] sm:$0xff]
        %v1145 = vld [vmem:[%s284 + $0x170] sm:$0xff]
        %v1146 = vld [vmem:[%s284 + $0x178] sm:$0xff]
        %v1147 = vld [vmem:[%s284 + $0x180] sm:$0xff]
        %v1148 = vld [vmem:[%s284 + $0x188] sm:$0xff]
        %v1149 = vld [vmem:[%s284 + $0x190] sm:$0xff]
        %v1150 = vld [vmem:[%s284 + $0x198] sm:$0xff]
        %v1151 = vld [vmem:[%s284 + $0x1a0] sm:$0xff]
        %v1152 = vld [vmem:[%s284 + $0x1a8] sm:$0xff]
        %v1153 = vld [vmem:[%s284 + $0x1b0] sm:$0xff]
        %v1154 = vld [vmem:[%s284 + $0x1b8] sm:$0xff]
        %v1155 = vld [vmem:[%s284 + $0x1c0] sm:$0xff]
        %v1156 = vld [vmem:[%s284 + $0x1c8] sm:$0xff]
        %v1157 = vld [vmem:[%s284 + $0x1d0] sm:$0xff]
        %v1158 = vld [vmem:[%s284 + $0x1d8] sm:$0xff]
        %v1159 = vld [vmem:[%s284 + $0x1e0] sm:$0xff]
        %v1160 = vld [vmem:[%s284 + $0x1e8] sm:$0xff]
        %v1161 = vld [vmem:[%s284 + $0x1f0] sm:$0xff]
        %v1162 = vld [vmem:[%s284 + $0x1f8] sm:$0xff]
        %1163 = vmatpush.msra.mxu0 %v1114
        %1164 = vmatpush.msra.mxu0 %v1113
        %1165 = vmatpush.msra.mxu0 %v1112
        %1166 = vmatpush.msra.mxu0 %v1111
        %1167 = vmatpush.msra.mxu0 %v1110
        %1168 = vmatpush.msra.mxu0 %v1109
        %1169 = vmatpush.msra.mxu0 %v1108
        %1170 = vmatpush.msra.mxu0 %v1107
        %1171 = vmatpush.msra.mxu0 %v1106
        %1172 = vmatpush.msra.mxu0 %v1105
        %1173 = vmatpush.msra.mxu0 %v1104
        %1174 = vmatpush.msra.mxu0 %v1103
        %1175 = vmatpush.msra.mxu0 %v1102
        %1176 = vmatpush.msra.mxu0 %v1101
        %1177 = vmatpush.msra.mxu0 %v1100
        %1178 = vmatpush.msra.mxu0 %v1099
        %1179 = vmatmul.f32.gmra.mxu0 %v939
        %v1180 = vpop.f32.mrf.mxu0
        %v1181 = vadd.f32 0.0, %v1180
        %1182 = vmatmul.f32.gmra.mxu0 %v943
        %v1183 = vpop.f32.mrf.mxu0
        %v1184 = vadd.f32 0.0, %v1183
        %1185 = vmatmul.f32.gmra.mxu0 %v947
        %v1186 = vpop.f32.mrf.mxu0
        %v1187 = vadd.f32 0.0, %v1186
        %1188 = vmatmul.f32.gmra.mxu0 %v951
        %v1189 = vpop.f32.mrf.mxu0
        %v1190 = vadd.f32 0.0, %v1189
        %1191 = vmatmul.f32.gmra.mxu0 %v955
        %v1192 = vpop.f32.mrf.mxu0
        %v1193 = vadd.f32 0.0, %v1192
        %1194 = vmatmul.f32.gmra.mxu0 %v959
        %v1195 = vpop.f32.mrf.mxu0
        %v1196 = vadd.f32 0.0, %v1195
        %1197 = vmatmul.f32.gmra.mxu0 %v963
        %v1198 = vpop.f32.mrf.mxu0
        %v1199 = vadd.f32 0.0, %v1198
        %1200 = vmatmul.f32.gmra.mxu0 %v967
        %v1201 = vpop.f32.mrf.mxu0
        %v1202 = vadd.f32 0.0, %v1201
        %1203 = vmatmul.f32.gmra.mxu0 %v971
        %v1204 = vpop.f32.mrf.mxu0
        %v1205 = vadd.f32 0.0, %v1204
        %1206 = vmatmul.f32.gmra.mxu0 %v975
        %v1207 = vpop.f32.mrf.mxu0
        %v1208 = vadd.f32 0.0, %v1207
        %1209 = vmatmul.f32.gmra.mxu0 %v979
        %v1210 = vpop.f32.mrf.mxu0
        %v1211 = vadd.f32 0.0, %v1210
        %1212 = vmatmul.f32.gmra.mxu0 %v983
        %v1213 = vpop.f32.mrf.mxu0
        %v1214 = vadd.f32 0.0, %v1213
        %1215 = vmatmul.f32.gmra.mxu0 %v987
        %v1216 = vpop.f32.mrf.mxu0
        %v1217 = vadd.f32 0.0, %v1216
        %1218 = vmatmul.f32.gmra.mxu0 %v991
        %v1219 = vpop.f32.mrf.mxu0
        %v1220 = vadd.f32 0.0, %v1219
        %1221 = vmatmul.f32.gmra.mxu0 %v995
        %v1222 = vpop.f32.mrf.mxu0
        %v1223 = vadd.f32 0.0, %v1222
        %1224 = vmatmul.f32.gmra.mxu0 %v999
        %v1225 = vpop.f32.mrf.mxu0
        %v1226 = vadd.f32 0.0, %v1225
        %1227 = vmatmul.f32.gmra.mxu0 %v1003
        %v1228 = vpop.f32.mrf.mxu0
        %v1229 = vadd.f32 0.0, %v1228
        %1230 = vmatmul.f32.gmra.mxu0 %v1007
        %v1231 = vpop.f32.mrf.mxu0
        %v1232 = vadd.f32 0.0, %v1231
        %1233 = vmatmul.f32.gmra.mxu0 %v1011
        %v1234 = vpop.f32.mrf.mxu0
        %v1235 = vadd.f32 0.0, %v1234
        %1236 = vmatmul.f32.gmra.mxu0 %v1015
        %v1237 = vpop.f32.mrf.mxu0
        %v1238 = vadd.f32 0.0, %v1237
        %1239 = vmatmul.f32.gmra.mxu0 %v1019
        %v1240 = vpop.f32.mrf.mxu0
        %v1241 = vadd.f32 0.0, %v1240
        %1242 = vmatmul.f32.gmra.mxu0 %v1023
        %v1243 = vpop.f32.mrf.mxu0
        %v1244 = vadd.f32 0.0, %v1243
        %1245 = vmatmul.f32.gmra.mxu0 %v1027
        %v1246 = vpop.f32.mrf.mxu0
        %v1247 = vadd.f32 0.0, %v1246
        %1248 = vmatmul.f32.gmra.mxu0 %v1031
        %v1249 = vpop.f32.mrf.mxu0
        %v1250 = vadd.f32 0.0, %v1249
        %1251 = vmatmul.f32.gmra.mxu0 %v1035
        %v1252 = vpop.f32.mrf.mxu0
        %v1253 = vadd.f32 0.0, %v1252
        %1254 = vmatmul.f32.gmra.mxu0 %v1039
        %v1255 = vpop.f32.mrf.mxu0
        %v1256 = vadd.f32 0.0, %v1255
        %1257 = vmatmul.f32.gmra.mxu0 %v1043
        %v1258 = vpop.f32.mrf.mxu0
        %v1259 = vadd.f32 0.0, %v1258
        %1260 = vmatmul.f32.gmra.mxu0 %v1047
        %v1261 = vpop.f32.mrf.mxu0
        %v1262 = vadd.f32 0.0, %v1261
        %1263 = vmatmul.f32.gmra.mxu0 %v1051
        %v1264 = vpop.f32.mrf.mxu0
        %v1265 = vadd.f32 0.0, %v1264
        %1266 = vmatmul.f32.gmra.mxu0 %v1055
        %v1267 = vpop.f32.mrf.mxu0
        %v1268 = vadd.f32 0.0, %v1267
        %1269 = vmatmul.f32.gmra.mxu0 %v1059
        %v1270 = vpop.f32.mrf.mxu0
        %v1271 = vadd.f32 0.0, %v1270
        %1272 = vmatmul.f32.gmra.mxu0 %v1063
        %v1273 = vpop.f32.mrf.mxu0
        %v1274 = vadd.f32 0.0, %v1273
        %1275 = vdwg.mxu0
        %1276 = vmatpush.msra.mxu0 %v1130
        %1277 = vmatpush.msra.mxu0 %v1129
        %1278 = vmatpush.msra.mxu0 %v1128
        %1279 = vmatpush.msra.mxu0 %v1127
        %1280 = vmatpush.msra.mxu0 %v1126
        %1281 = vmatpush.msra.mxu0 %v1125
        %1282 = vmatpush.msra.mxu0 %v1124
        %1283 = vmatpush.msra.mxu0 %v1123
        %1284 = vmatpush.msra.mxu0 %v1122
        %1285 = vmatpush.msra.mxu0 %v1121
        %1286 = vmatpush.msra.mxu0 %v1120
        %1287 = vmatpush.msra.mxu0 %v1119
        %1288 = vmatpush.msra.mxu0 %v1118
        %1289 = vmatpush.msra.mxu0 %v1117
        %1290 = vmatpush.msra.mxu0 %v1116
        %1291 = vmatpush.msra.mxu0 %v1115
        %1292 = vmatmul.f32.gmra.mxu0 %v940
        %v1293 = vpop.f32.mrf.mxu0
        %v1294 = vadd.f32 %v1181, %v1293
        %1295 = vmatmul.f32.gmra.mxu0 %v944
        %v1296 = vpop.f32.mrf.mxu0
        %v1297 = vadd.f32 %v1184, %v1296
        %1298 = vmatmul.f32.gmra.mxu0 %v948
        %v1299 = vpop.f32.mrf.mxu0
        %v1300 = vadd.f32 %v1187, %v1299
        %1301 = vmatmul.f32.gmra.mxu0 %v952
        %v1302 = vpop.f32.mrf.mxu0
        %v1303 = vadd.f32 %v1190, %v1302
        %1304 = vmatmul.f32.gmra.mxu0 %v956
        %v1305 = vpop.f32.mrf.mxu0
        %v1306 = vadd.f32 %v1193, %v1305
        %1307 = vmatmul.f32.gmra.mxu0 %v960
        %v1308 = vpop.f32.mrf.mxu0
        %v1309 = vadd.f32 %v1196, %v1308
        %1310 = vmatmul.f32.gmra.mxu0 %v964
        %v1311 = vpop.f32.mrf.mxu0
        %v1312 = vadd.f32 %v1199, %v1311
        %1313 = vmatmul.f32.gmra.mxu0 %v968
        %v1314 = vpop.f32.mrf.mxu0
        %v1315 = vadd.f32 %v1202, %v1314
        %1316 = vmatmul.f32.gmra.mxu0 %v972
        %v1317 = vpop.f32.mrf.mxu0
        %v1318 = vadd.f32 %v1205, %v1317
        %1319 = vmatmul.f32.gmra.mxu0 %v976
        %v1320 = vpop.f32.mrf.mxu0
        %v1321 = vadd.f32 %v1208, %v1320
        %1322 = vmatmul.f32.gmra.mxu0 %v980
        %v1323 = vpop.f32.mrf.mxu0
        %v1324 = vadd.f32 %v1211, %v1323
        %1325 = vmatmul.f32.gmra.mxu0 %v984
        %v1326 = vpop.f32.mrf.mxu0
        %v1327 = vadd.f32 %v1214, %v1326
        %1328 = vmatmul.f32.gmra.mxu0 %v988
        %v1329 = vpop.f32.mrf.mxu0
        %v1330 = vadd.f32 %v1217, %v1329
        %1331 = vmatmul.f32.gmra.mxu0 %v992
        %v1332 = vpop.f32.mrf.mxu0
        %v1333 = vadd.f32 %v1220, %v1332
        %1334 = vmatmul.f32.gmra.mxu0 %v996
        %v1335 = vpop.f32.mrf.mxu0
        %v1336 = vadd.f32 %v1223, %v1335
        %1337 = vmatmul.f32.gmra.mxu0 %v1000
        %v1338 = vpop.f32.mrf.mxu0
        %v1339 = vadd.f32 %v1226, %v1338
        %1340 = vmatmul.f32.gmra.mxu0 %v1004
        %v1341 = vpop.f32.mrf.mxu0
        %v1342 = vadd.f32 %v1229, %v1341
        %1343 = vmatmul.f32.gmra.mxu0 %v1008
        %v1344 = vpop.f32.mrf.mxu0
        %v1345 = vadd.f32 %v1232, %v1344
        %1346 = vmatmul.f32.gmra.mxu0 %v1012
        %v1347 = vpop.f32.mrf.mxu0
        %v1348 = vadd.f32 %v1235, %v1347
        %1349 = vmatmul.f32.gmra.mxu0 %v1016
        %v1350 = vpop.f32.mrf.mxu0
        %v1351 = vadd.f32 %v1238, %v1350
        %1352 = vmatmul.f32.gmra.mxu0 %v1020
        %v1353 = vpop.f32.mrf.mxu0
        %v1354 = vadd.f32 %v1241, %v1353
        %1355 = vmatmul.f32.gmra.mxu0 %v1024
        %v1356 = vpop.f32.mrf.mxu0
        %v1357 = vadd.f32 %v1244, %v1356
        %1358 = vmatmul.f32.gmra.mxu0 %v1028
        %v1359 = vpop.f32.mrf.mxu0
        %v1360 = vadd.f32 %v1247, %v1359
        %1361 = vmatmul.f32.gmra.mxu0 %v1032
        %v1362 = vpop.f32.mrf.mxu0
        %v1363 = vadd.f32 %v1250, %v1362
        %1364 = vmatmul.f32.gmra.mxu0 %v1036
        %v1365 = vpop.f32.mrf.mxu0
        %v1366 = vadd.f32 %v1253, %v1365
        %1367 = vmatmul.f32.gmra.mxu0 %v1040
        %v1368 = vpop.f32.mrf.mxu0
        %v1369 = vadd.f32 %v1256, %v1368
        %1370 = vmatmul.f32.gmra.mxu0 %v1044
        %v1371 = vpop.f32.mrf.mxu0
        %v1372 = vadd.f32 %v1259, %v1371
        %1373 = vmatmul.f32.gmra.mxu0 %v1048
        %v1374 = vpop.f32.mrf.mxu0
        %v1375 = vadd.f32 %v1262, %v1374
        %1376 = vmatmul.f32.gmra.mxu0 %v1052
        %v1377 = vpop.f32.mrf.mxu0
        %v1378 = vadd.f32 %v1265, %v1377
        %1379 = vmatmul.f32.gmra.mxu0 %v1056
        %v1380 = vpop.f32.mrf.mxu0
        %v1381 = vadd.f32 %v1268, %v1380
        %1382 = vmatmul.f32.gmra.mxu0 %v1060
        %v1383 = vpop.f32.mrf.mxu0
        %v1384 = vadd.f32 %v1271, %v1383
        %1385 = vmatmul.f32.gmra.mxu0 %v1064
        %v1386 = vpop.f32.mrf.mxu0
        %v1387 = vadd.f32 %v1274, %v1386
        %1388 = vdwg.mxu0
        %1389 = vmatpush.msra.mxu0 %v1146
        %1390 = vmatpush.msra.mxu0 %v1145
        %1391 = vmatpush.msra.mxu0 %v1144
        %1392 = vmatpush.msra.mxu0 %v1143
        %1393 = vmatpush.msra.mxu0 %v1142
        %1394 = vmatpush.msra.mxu0 %v1141
        %1395 = vmatpush.msra.mxu0 %v1140
        %1396 = vmatpush.msra.mxu0 %v1139
        %1397 = vmatpush.msra.mxu0 %v1138
        %1398 = vmatpush.msra.mxu0 %v1137
        %1399 = vmatpush.msra.mxu0 %v1136
        %1400 = vmatpush.msra.mxu0 %v1135
        %1401 = vmatpush.msra.mxu0 %v1134
        %1402 = vmatpush.msra.mxu0 %v1133
        %1403 = vmatpush.msra.mxu0 %v1132
        %1404 = vmatpush.msra.mxu0 %v1131
        %1405 = vmatmul.f32.gmra.mxu0 %v941
        %v1406 = vpop.f32.mrf.mxu0
        %v1407 = vadd.f32 %v1294, %v1406
        %1408 = vmatmul.f32.gmra.mxu0 %v945
        %v1409 = vpop.f32.mrf.mxu0
        %v1410 = vadd.f32 %v1297, %v1409
        %1411 = vmatmul.f32.gmra.mxu0 %v949
        %v1412 = vpop.f32.mrf.mxu0
        %v1413 = vadd.f32 %v1300, %v1412
        %1414 = vmatmul.f32.gmra.mxu0 %v953
        %v1415 = vpop.f32.mrf.mxu0
        %v1416 = vadd.f32 %v1303, %v1415
        %1417 = vmatmul.f32.gmra.mxu0 %v957
        %v1418 = vpop.f32.mrf.mxu0
        %v1419 = vadd.f32 %v1306, %v1418
        %1420 = vmatmul.f32.gmra.mxu0 %v961
        %v1421 = vpop.f32.mrf.mxu0
        %v1422 = vadd.f32 %v1309, %v1421
        %1423 = vmatmul.f32.gmra.mxu0 %v965
        %v1424 = vpop.f32.mrf.mxu0
        %v1425 = vadd.f32 %v1312, %v1424
        %1426 = vmatmul.f32.gmra.mxu0 %v969
        %v1427 = vpop.f32.mrf.mxu0
        %v1428 = vadd.f32 %v1315, %v1427
        %1429 = vmatmul.f32.gmra.mxu0 %v973
        %v1430 = vpop.f32.mrf.mxu0
        %v1431 = vadd.f32 %v1318, %v1430
        %1432 = vmatmul.f32.gmra.mxu0 %v977
        %v1433 = vpop.f32.mrf.mxu0
        %v1434 = vadd.f32 %v1321, %v1433
        %1435 = vmatmul.f32.gmra.mxu0 %v981
        %v1436 = vpop.f32.mrf.mxu0
        %v1437 = vadd.f32 %v1324, %v1436
        %1438 = vmatmul.f32.gmra.mxu0 %v985
        %v1439 = vpop.f32.mrf.mxu0
        %v1440 = vadd.f32 %v1327, %v1439
        %1441 = vmatmul.f32.gmra.mxu0 %v989
        %v1442 = vpop.f32.mrf.mxu0
        %v1443 = vadd.f32 %v1330, %v1442
        %1444 = vmatmul.f32.gmra.mxu0 %v993
        %v1445 = vpop.f32.mrf.mxu0
        %v1446 = vadd.f32 %v1333, %v1445
        %1447 = vmatmul.f32.gmra.mxu0 %v997
        %v1448 = vpop.f32.mrf.mxu0
        %v1449 = vadd.f32 %v1336, %v1448
        %1450 = vmatmul.f32.gmra.mxu0 %v1001
        %v1451 = vpop.f32.mrf.mxu0
        %v1452 = vadd.f32 %v1339, %v1451
        %1453 = vmatmul.f32.gmra.mxu0 %v1005
        %v1454 = vpop.f32.mrf.mxu0
        %v1455 = vadd.f32 %v1342, %v1454
        %1456 = vmatmul.f32.gmra.mxu0 %v1009
        %v1457 = vpop.f32.mrf.mxu0
        %v1458 = vadd.f32 %v1345, %v1457
        %1459 = vmatmul.f32.gmra.mxu0 %v1013
        %v1460 = vpop.f32.mrf.mxu0
        %v1461 = vadd.f32 %v1348, %v1460
        %1462 = vmatmul.f32.gmra.mxu0 %v1017
        %v1463 = vpop.f32.mrf.mxu0
        %v1464 = vadd.f32 %v1351, %v1463
        %1465 = vmatmul.f32.gmra.mxu0 %v1021
        %v1466 = vpop.f32.mrf.mxu0
        %v1467 = vadd.f32 %v1354, %v1466
        %1468 = vmatmul.f32.gmra.mxu0 %v1025
        %v1469 = vpop.f32.mrf.mxu0
        %v1470 = vadd.f32 %v1357, %v1469
        %1471 = vmatmul.f32.gmra.mxu0 %v1029
        %v1472 = vpop.f32.mrf.mxu0
        %v1473 = vadd.f32 %v1360, %v1472
        %1474 = vmatmul.f32.gmra.mxu0 %v1033
        %v1475 = vpop.f32.mrf.mxu0
        %v1476 = vadd.f32 %v1363, %v1475
        %1477 = vmatmul.f32.gmra.mxu0 %v1037
        %v1478 = vpop.f32.mrf.mxu0
        %v1479 = vadd.f32 %v1366, %v1478
        %1480 = vmatmul.f32.gmra.mxu0 %v1041
        %v1481 = vpop.f32.mrf.mxu0
        %v1482 = vadd.f32 %v1369, %v1481
        %1483 = vmatmul.f32.gmra.mxu0 %v1045
        %v1484 = vpop.f32.mrf.mxu0
        %v1485 = vadd.f32 %v1372, %v1484
        %1486 = vmatmul.f32.gmra.mxu0 %v1049
        %v1487 = vpop.f32.mrf.mxu0
        %v1488 = vadd.f32 %v1375, %v1487
        %1489 = vmatmul.f32.gmra.mxu0 %v1053
        %v1490 = vpop.f32.mrf.mxu0
        %v1491 = vadd.f32 %v1378, %v1490
        %1492 = vmatmul.f32.gmra.mxu0 %v1057
        %v1493 = vpop.f32.mrf.mxu0
        %v1494 = vadd.f32 %v1381, %v1493
        %1495 = vmatmul.f32.gmra.mxu0 %v1061
        %v1496 = vpop.f32.mrf.mxu0
        %v1497 = vadd.f32 %v1384, %v1496
        %1498 = vmatmul.f32.gmra.mxu0 %v1065
        %v1499 = vpop.f32.mrf.mxu0
        %v1500 = vadd.f32 %v1387, %v1499
        %1501 = vdwg.mxu0
        %1502 = vmatpush.msra.mxu0 %v1162
        %1503 = vmatpush.msra.mxu0 %v1161
        %1504 = vmatpush.msra.mxu0 %v1160
        %1505 = vmatpush.msra.mxu0 %v1159
        %1506 = vmatpush.msra.mxu0 %v1158
        %1507 = vmatpush.msra.mxu0 %v1157
        %1508 = vmatpush.msra.mxu0 %v1156
        %1509 = vmatpush.msra.mxu0 %v1155
        %1510 = vmatpush.msra.mxu0 %v1154
        %1511 = vmatpush.msra.mxu0 %v1153
        %1512 = vmatpush.msra.mxu0 %v1152
        %1513 = vmatpush.msra.mxu0 %v1151
        %1514 = vmatpush.msra.mxu0 %v1150
        %1515 = vmatpush.msra.mxu0 %v1149
        %1516 = vmatpush.msra.mxu0 %v1148
        %1517 = vmatpush.msra.mxu0 %v1147
        %1518 = vmatmul.f32.gmra.mxu0 %v942
        %v1519 = vpop.f32.mrf.mxu0
        %v1520 = vadd.f32 %v1407, %v1519
        %1521 = vmatmul.f32.gmra.mxu0 %v946
        %v1522 = vpop.f32.mrf.mxu0
        %v1523 = vadd.f32 %v1410, %v1522
        %1524 = vmatmul.f32.gmra.mxu0 %v950
        %v1525 = vpop.f32.mrf.mxu0
        %v1526 = vadd.f32 %v1413, %v1525
        %1527 = vmatmul.f32.gmra.mxu0 %v954
        %v1528 = vpop.f32.mrf.mxu0
        %v1529 = vadd.f32 %v1416, %v1528
        %1530 = vmatmul.f32.gmra.mxu0 %v958
        %v1531 = vpop.f32.mrf.mxu0
        %v1532 = vadd.f32 %v1419, %v1531
        %1533 = vmatmul.f32.gmra.mxu0 %v962
        %v1534 = vpop.f32.mrf.mxu0
        %v1535 = vadd.f32 %v1422, %v1534
        %1536 = vmatmul.f32.gmra.mxu0 %v966
        %v1537 = vpop.f32.mrf.mxu0
        %v1538 = vadd.f32 %v1425, %v1537
        %1539 = vmatmul.f32.gmra.mxu0 %v970
        %v1540 = vpop.f32.mrf.mxu0
        %v1541 = vadd.f32 %v1428, %v1540
        %1542 = vmatmul.f32.gmra.mxu0 %v974
        %v1543 = vpop.f32.mrf.mxu0
        %v1544 = vadd.f32 %v1431, %v1543
        %1545 = vmatmul.f32.gmra.mxu0 %v978
        %v1546 = vpop.f32.mrf.mxu0
        %v1547 = vadd.f32 %v1434, %v1546
        %1548 = vmatmul.f32.gmra.mxu0 %v982
        %v1549 = vpop.f32.mrf.mxu0
        %v1550 = vadd.f32 %v1437, %v1549
        %1551 = vmatmul.f32.gmra.mxu0 %v986
        %v1552 = vpop.f32.mrf.mxu0
        %v1553 = vadd.f32 %v1440, %v1552
        %1554 = vmatmul.f32.gmra.mxu0 %v990
        %v1555 = vpop.f32.mrf.mxu0
        %v1556 = vadd.f32 %v1443, %v1555
        %1557 = vmatmul.f32.gmra.mxu0 %v994
        %v1558 = vpop.f32.mrf.mxu0
        %v1559 = vadd.f32 %v1446, %v1558
        %1560 = vmatmul.f32.gmra.mxu0 %v998
        %v1561 = vpop.f32.mrf.mxu0
        %v1562 = vadd.f32 %v1449, %v1561
        %1563 = vmatmul.f32.gmra.mxu0 %v1002
        %v1564 = vpop.f32.mrf.mxu0
        %v1565 = vadd.f32 %v1452, %v1564
        %1566 = vmatmul.f32.gmra.mxu0 %v1006
        %v1567 = vpop.f32.mrf.mxu0
        %v1568 = vadd.f32 %v1455, %v1567
        %1569 = vmatmul.f32.gmra.mxu0 %v1010
        %v1570 = vpop.f32.mrf.mxu0
        %v1571 = vadd.f32 %v1458, %v1570
        %1572 = vmatmul.f32.gmra.mxu0 %v1014
        %v1573 = vpop.f32.mrf.mxu0
        %v1574 = vadd.f32 %v1461, %v1573
        %1575 = vmatmul.f32.gmra.mxu0 %v1018
        %v1576 = vpop.f32.mrf.mxu0
        %v1577 = vadd.f32 %v1464, %v1576
        %1578 = vmatmul.f32.gmra.mxu0 %v1022
        %v1579 = vpop.f32.mrf.mxu0
        %v1580 = vadd.f32 %v1467, %v1579
        %1581 = vmatmul.f32.gmra.mxu0 %v1026
        %v1582 = vpop.f32.mrf.mxu0
        %v1583 = vadd.f32 %v1470, %v1582
        %1584 = vmatmul.f32.gmra.mxu0 %v1030
        %v1585 = vpop.f32.mrf.mxu0
        %v1586 = vadd.f32 %v1473, %v1585
        %1587 = vmatmul.f32.gmra.mxu0 %v1034
        %v1588 = vpop.f32.mrf.mxu0
        %v1589 = vadd.f32 %v1476, %v1588
        %1590 = vmatmul.f32.gmra.mxu0 %v1038
        %v1591 = vpop.f32.mrf.mxu0
        %v1592 = vadd.f32 %v1479, %v1591
        %1593 = vmatmul.f32.gmra.mxu0 %v1042
        %v1594 = vpop.f32.mrf.mxu0
        %v1595 = vadd.f32 %v1482, %v1594
        %1596 = vmatmul.f32.gmra.mxu0 %v1046
        %v1597 = vpop.f32.mrf.mxu0
        %v1598 = vadd.f32 %v1485, %v1597
        %1599 = vmatmul.f32.gmra.mxu0 %v1050
        %v1600 = vpop.f32.mrf.mxu0
        %v1601 = vadd.f32 %v1488, %v1600
        %1602 = vmatmul.f32.gmra.mxu0 %v1054
        %v1603 = vpop.f32.mrf.mxu0
        %v1604 = vadd.f32 %v1491, %v1603
        %1605 = vmatmul.f32.gmra.mxu0 %v1058
        %v1606 = vpop.f32.mrf.mxu0
        %v1607 = vadd.f32 %v1494, %v1606
        %1608 = vmatmul.f32.gmra.mxu0 %v1062
        %v1609 = vpop.f32.mrf.mxu0
        %v1610 = vadd.f32 %v1497, %v1609
        %1611 = vmatmul.f32.gmra.mxu0 %v1066
        %v1612 = vpop.f32.mrf.mxu0
        %v1613 = vadd.f32 %v1500, %v1612
        %1614 = vdwg.mxu0
        %v1615 = vadd.f32 %v1067, %v1520
        %v1616 = vadd.f32 %v1068, %v1523
        %v1617 = vadd.f32 %v1069, %v1526
        %v1618 = vadd.f32 %v1070, %v1529
        %v1619 = vadd.f32 %v1071, %v1532
        %v1620 = vadd.f32 %v1072, %v1535
        %v1621 = vadd.f32 %v1073, %v1538
        %v1622 = vadd.f32 %v1074, %v1541
        %v1623 = vadd.f32 %v1075, %v1544
        %v1624 = vadd.f32 %v1076, %v1547
        %v1625 = vadd.f32 %v1077, %v1550
        %v1626 = vadd.f32 %v1078, %v1553
        %v1627 = vadd.f32 %v1079, %v1556
        %v1628 = vadd.f32 %v1080, %v1559
        %v1629 = vadd.f32 %v1081, %v1562
        %v1630 = vadd.f32 %v1082, %v1565
        %v1631 = vadd.f32 %v1083, %v1568
        %v1632 = vadd.f32 %v1084, %v1571
        %v1633 = vadd.f32 %v1085, %v1574
        %v1634 = vadd.f32 %v1086, %v1577
        %v1635 = vadd.f32 %v1087, %v1580
        %v1636 = vadd.f32 %v1088, %v1583
        %v1637 = vadd.f32 %v1089, %v1586
        %v1638 = vadd.f32 %v1090, %v1589
        %v1639 = vadd.f32 %v1091, %v1592
        %v1640 = vadd.f32 %v1092, %v1595
        %v1641 = vadd.f32 %v1093, %v1598
        %v1642 = vadd.f32 %v1094, %v1601
        %v1643 = vadd.f32 %v1095, %v1604
        %v1644 = vadd.f32 %v1096, %v1607
        %v1645 = vadd.f32 %v1097, %v1610
        %v1646 = vadd.f32 %v1098, %v1613
        %1647 = vst [vmem:[#allocation2] sm:$0xff] %v1615
        %1648 = vst [vmem:[#allocation2 + $0x8] sm:$0xff] %v1616
        %1649 = vst [vmem:[#allocation2 + $0x10] sm:$0xff] %v1617
        %1650 = vst [vmem:[#allocation2 + $0x18] sm:$0xff] %v1618
        %1651 = vst [vmem:[#allocation2 + $0x20] sm:$0xff] %v1619
        %1652 = vst [vmem:[#allocation2 + $0x28] sm:$0xff] %v1620
        %1653 = vst [vmem:[#allocation2 + $0x30] sm:$0xff] %v1621
        %1654 = vst [vmem:[#allocation2 + $0x38] sm:$0xff] %v1622
        %1655 = vst [vmem:[#allocation2 + $0x40] sm:$0xff] %v1623
        %1656 = vst [vmem:[#allocation2 + $0x48] sm:$0xff] %v1624
        %1657 = vst [vmem:[#allocation2 + $0x50] sm:$0xff] %v1625
        %1658 = vst [vmem:[#allocation2 + $0x58] sm:$0xff] %v1626
        %1659 = vst [vmem:[#allocation2 + $0x60] sm:$0xff] %v1627
        %1660 = vst [vmem:[#allocation2 + $0x68] sm:$0xff] %v1628
        %1661 = vst [vmem:[#allocation2 + $0x70] sm:$0xff] %v1629
        %1662 = vst [vmem:[#allocation2 + $0x78] sm:$0xff] %v1630
        %1663 = vst [vmem:[#allocation2 + $0x80] sm:$0xff] %v1631
        %1664 = vst [vmem:[#allocation2 + $0x88] sm:$0xff] %v1632
        %1665 = vst [vmem:[#allocation2 + $0x90] sm:$0xff] %v1633
        %1666 = vst [vmem:[#allocation2 + $0x98] sm:$0xff] %v1634
        %1667 = vst [vmem:[#allocation2 + $0xa0] sm:$0xff] %v1635
        %1668 = vst [vmem:[#allocation2 + $0xa8] sm:$0xff] %v1636
        %1669 = vst [vmem:[#allocation2 + $0xb0] sm:$0xff] %v1637
        %1670 = vst [vmem:[#allocation2 + $0xb8] sm:$0xff] %v1638
        %1671 = vst [vmem:[#allocation2 + $0xc0] sm:$0xff] %v1639
        %1672 = vst [vmem:[#allocation2 + $0xc8] sm:$0xff] %v1640
        %1673 = vst [vmem:[#allocation2 + $0xd0] sm:$0xff] %v1641
        %1674 = vst [vmem:[#allocation2 + $0xd8] sm:$0xff] %v1642
        %1675 = vst [vmem:[#allocation2 + $0xe0] sm:$0xff] %v1643
        %1676 = vst [vmem:[#allocation2 + $0xe8] sm:$0xff] %v1644
        %1677 = vst [vmem:[#allocation2 + $0xf0] sm:$0xff] %v1645
        %1678 = vst [vmem:[#allocation2 + $0xf8] sm:$0xff] %v1646
        %p1679 = scmp.eq.s32.totalorder %s27, 1
        // Predicated region
        $region53: #{position_wise_fc.1} parent=39 // pred_check
          %p1680 = pneg %p1679
        $region54: #{position_wise_fc.1} parent=39 // pred_check_branch
          %1682 = sbr.rel (%p1680) target = $region56
        $region55: #{position_wise_fc.1} parent=39 // pred_region
          %v1683 = vld [vmem:[#allocation2] sm:$0xff]
          %v1684 = vld [vmem:[#allocation2 + $0x8] sm:$0xff]
          %v1685 = vld [vmem:[#allocation2 + $0x10] sm:$0xff]
          %v1686 = vld [vmem:[#allocation2 + $0x18] sm:$0xff]
          %v1687 = vld [vmem:[#allocation2 + $0x20] sm:$0xff]
          %v1688 = vld [vmem:[#allocation2 + $0x28] sm:$0xff]
          %v1689 = vld [vmem:[#allocation2 + $0x30] sm:$0xff]
          %v1690 = vld [vmem:[#allocation2 + $0x38] sm:$0xff]
          %v1691 = vld [vmem:[#allocation2 + $0x40] sm:$0xff]
          %v1692 = vld [vmem:[#allocation2 + $0x48] sm:$0xff]
          %v1693 = vld [vmem:[#allocation2 + $0x50] sm:$0xff]
          %v1694 = vld [vmem:[#allocation2 + $0x58] sm:$0xff]
          %v1695 = vld [vmem:[#allocation2 + $0x60] sm:$0xff]
          %v1696 = vld [vmem:[#allocation2 + $0x68] sm:$0xff]
          %v1697 = vld [vmem:[#allocation2 + $0x70] sm:$0xff]
          %v1698 = vld [vmem:[#allocation2 + $0x78] sm:$0xff]
          %v1699 = vld [vmem:[#allocation2 + $0x80] sm:$0xff]
          %v1700 = vld [vmem:[#allocation2 + $0x88] sm:$0xff]
          %v1701 = vld [vmem:[#allocation2 + $0x90] sm:$0xff]
          %v1702 = vld [vmem:[#allocation2 + $0x98] sm:$0xff]
          %v1703 = vld [vmem:[#allocation2 + $0xa0] sm:$0xff]
          %v1704 = vld [vmem:[#allocation2 + $0xa8] sm:$0xff]
          %v1705 = vld [vmem:[#allocation2 + $0xb0] sm:$0xff]
          %v1706 = vld [vmem:[#allocation2 + $0xb8] sm:$0xff]
          %v1707 = vld [vmem:[#allocation2 + $0xc0] sm:$0xff]
          %v1708 = vld [vmem:[#allocation2 + $0xc8] sm:$0xff]
          %v1709 = vld [vmem:[#allocation2 + $0xd0] sm:$0xff]
          %v1710 = vld [vmem:[#allocation2 + $0xd8] sm:$0xff]
          %v1711 = vld [vmem:[#allocation2 + $0xe0] sm:$0xff]
          %v1712 = vld [vmem:[#allocation2 + $0xe8] sm:$0xff]
          %v1713 = vld [vmem:[#allocation2 + $0xf0] sm:$0xff]
          %v1714 = vld [vmem:[#allocation2 + $0xf8] sm:$0xff]
          %v1715 = vld [vmem:[%s4] sm:$0x1]
          %v1717 = vperm.slane %v1715, 0
          %v1719 = vadd.f32 %v1683, %v1717
          %v1720 = vadd.f32 %v1684, %v1717
          %v1721 = vadd.f32 %v1685, %v1717
          %v1722 = vadd.f32 %v1686, %v1717
          %v1723 = vadd.f32 %v1687, %v1717
          %v1724 = vadd.f32 %v1688, %v1717
          %v1725 = vadd.f32 %v1689, %v1717
          %v1726 = vadd.f32 %v1690, %v1717
          %v1727 = vadd.f32 %v1691, %v1717
          %v1728 = vadd.f32 %v1692, %v1717
          %v1729 = vadd.f32 %v1693, %v1717
          %v1730 = vadd.f32 %v1694, %v1717
          %v1731 = vadd.f32 %v1695, %v1717
          %v1732 = vadd.f32 %v1696, %v1717
          %v1733 = vadd.f32 %v1697, %v1717
          %v1734 = vadd.f32 %v1698, %v1717
          %v1735 = vadd.f32 %v1699, %v1717
          %v1736 = vadd.f32 %v1700, %v1717
          %v1737 = vadd.f32 %v1701, %v1717
          %v1738 = vadd.f32 %v1702, %v1717
          %v1739 = vadd.f32 %v1703, %v1717
          %v1740 = vadd.f32 %v1704, %v1717
          %v1741 = vadd.f32 %v1705, %v1717
          %v1742 = vadd.f32 %v1706, %v1717
          %v1743 = vadd.f32 %v1707, %v1717
          %v1744 = vadd.f32 %v1708, %v1717
          %v1745 = vadd.f32 %v1709, %v1717
          %v1746 = vadd.f32 %v1710, %v1717
          %v1747 = vadd.f32 %v1711, %v1717
          %v1748 = vadd.f32 %v1712, %v1717
          %v1749 = vadd.f32 %v1713, %v1717
          %v1750 = vadd.f32 %v1714, %v1717
          %1751 = vst [vmem:[%s343] sm:$0xff] %v1719
          %1752 = vst [vmem:[%s343 + $0x8] sm:$0xff] %v1720
          %1753 = vst [vmem:[%s343 + $0x10] sm:$0xff] %v1721
          %1754 = vst [vmem:[%s343 + $0x18] sm:$0xff] %v1722
          %1755 = vst [vmem:[%s343 + $0x20] sm:$0xff] %v1723
          %1756 = vst [vmem:[%s343 + $0x28] sm:$0xff] %v1724
          %1757 = vst [vmem:[%s343 + $0x30] sm:$0xff] %v1725
          %1758 = vst [vmem:[%s343 + $0x38] sm:$0xff] %v1726
          %1759 = vst [vmem:[%s343 + $0x40] sm:$0xff] %v1727
          %1760 = vst [vmem:[%s343 + $0x48] sm:$0xff] %v1728
          %1761 = vst [vmem:[%s343 + $0x50] sm:$0xff] %v1729
          %1762 = vst [vmem:[%s343 + $0x58] sm:$0xff] %v1730
          %1763 = vst [vmem:[%s343 + $0x60] sm:$0xff] %v1731
          %1764 = vst [vmem:[%s343 + $0x68] sm:$0xff] %v1732
          %1765 = vst [vmem:[%s343 + $0x70] sm:$0xff] %v1733
          %1766 = vst [vmem:[%s343 + $0x78] sm:$0xff] %v1734
          %1767 = vst [vmem:[%s343 + $0x80] sm:$0xff] %v1735
          %1768 = vst [vmem:[%s343 + $0x88] sm:$0xff] %v1736
          %1769 = vst [vmem:[%s343 + $0x90] sm:$0xff] %v1737
          %1770 = vst [vmem:[%s343 + $0x98] sm:$0xff] %v1738
          %1771 = vst [vmem:[%s343 + $0xa0] sm:$0xff] %v1739
          %1772 = vst [vmem:[%s343 + $0xa8] sm:$0xff] %v1740
          %1773 = vst [vmem:[%s343 + $0xb0] sm:$0xff] %v1741
          %1774 = vst [vmem:[%s343 + $0xb8] sm:$0xff] %v1742
          %1775 = vst [vmem:[%s343 + $0xc0] sm:$0xff] %v1743
          %1776 = vst [vmem:[%s343 + $0xc8] sm:$0xff] %v1744
          %1777 = vst [vmem:[%s343 + $0xd0] sm:$0xff] %v1745
          %1778 = vst [vmem:[%s343 + $0xd8] sm:$0xff] %v1746
          %1779 = vst [vmem:[%s343 + $0xe0] sm:$0xff] %v1747
          %1780 = vst [vmem:[%s343 + $0xe8] sm:$0xff] %v1748
          %1781 = vst [vmem:[%s343 + $0xf0] sm:$0xff] %v1749
          %1782 = vst [vmem:[%s343 + $0xf8] sm:$0xff] %v1750
        $region56: #{position_wise_fc.1} parent=39 // pred_fallthru
          _
        %s1783 = smul.u32 32, %s26
        %p1784 = scmp.lt.s32.totalorder %s1783, 63
        %s1785 = scalar_select %p1784, %s1783, 63
        %s1786 = smul.addr %s1785, 8
        %s1787 = scalar_lea.vmem %s5, %s1786
        // Predicated region
        $region57: #{position_wise_fc.1} parent=39 // pred_check
          %p1788 = pneg %p177
        $region58: #{position_wise_fc.1} parent=39 // pred_check_branch
          %1790 = sbr.rel (%p1788) target = $region60
        $region59: #{position_wise_fc.1} parent=39 // pred_region
          %s1791 = smul.u32 32, %s26
        $region60: #{position_wise_fc.1} parent=39 // pred_fallthru
          _
      $region40: #{position_wise_fc.1} parent=5 // pred_fallthru
        _
      %p1792 = scmp.le.s32.totalorder 2, %s17
      // Predicated region
      $region61: #{position_wise_fc.1} parent=5 // pred_check
        %p1793 = pneg %p1792
      $region62: #{position_wise_fc.1} parent=5 // pred_check_branch
        %1795 = sbr.rel (%p1793) target = $region64
      $region63: #{position_wise_fc.1} parent=5 // pred_region
        %s1796 = ssub.s32 %s17, 2
        // Predicated region
        $region65: #{position_wise_fc.1} parent=63 // pred_check
          %p1797 = pneg %p183
        $region66: #{position_wise_fc.1} parent=63 // pred_check_branch
          %1799 = sbr.rel (%p1797) target = $region68
        $region67: #{position_wise_fc.1} parent=63 // pred_region
          %s1800 = smul.u32 32, %s28
          %p1801 = scmp.lt.s32.totalorder %s1800, 63
          %s1802 = scalar_select %p1801, %s1800, 63
          %s1803 = smul.addr %s1802, 8
          %s1804 = scalar_lea.vmem %s5, %s1803
        $region68: #{position_wise_fc.1} parent=63 // pred_fallthru
          _
      $region64: #{position_wise_fc.1} parent=5 // pred_fallthru
        _
    $region6: #{position_wise_fc.1} parent=1 // loop_footer
      %s21 = sadd.s32 1, %s17
    $region7: #{position_wise_fc.1} parent=1 // loop_footer_branch
      %16 = sbr.rel target = $region3
    $region8: #{position_wise_fc.1} parent=1 // loop_exit
      _
    %1805 = vsyncpa [#allocation4], 1
    %s1806 = scalar_lea.sflag [#allocation4], 1
    %1807 = vsyncpa %s1806, 1
    %1808 = vsyncpa [#allocation6], 1
    %s1809 = scalar_lea.sflag [#allocation6], 1
    %1810 = vsyncpa %s1809, 1

</llo_original>
